<compile_context>
chip_gen: v7x
topology: tpu7x:2x2x1
jax: 0.10.0
libtpu: 0.0.40
codegen_flags: <defaults>
</compile_context>

<pallas_src>
import jax
import jax.numpy as jnp
from jax import lax
from jax.experimental import pallas as pl
from jax.experimental.pallas import tpu as pltpu

LANE = 128            # TPU vreg lane width
SUBLANE = 8           # f32 sublane count
MAX_HW_TILE = 1024    # lanes per grid step (multiple of 128), sized for v7x VMEM
VMEM_LIMIT = 32 * 1024 * 1024   # safe scoped-VMEM limit on v5e / v6e / v7x


def _round_up(x, m):
    return ((x + m - 1) // m) * m


# ---------------------------------------------------------------------------
# Host-side im2col for the (1, k, k) spatial conv, laid out per time-slab:
#   (B, C, T1, Hp, W) -> (B, T1, C*k*k, Ho*Wo)  with K ordered (ci, kh, kw)
# ---------------------------------------------------------------------------
def _im2col_spatial(xp, k, s):
    B, C, T1, Hp, W = xp.shape
    Ho = (Hp - k) // s + 1
    Wo = (W - k) // s + 1
    taps = []
    for kh in range(k):
        for kw in range(k):
            taps.append(xp[:, :, :, kh:kh + s * (Ho - 1) + 1:s,
                           kw:kw + s * (Wo - 1) + 1:s])
    p = jnp.stack(taps, axis=0)                    # (k*k, B, C, T1, Ho, Wo)
    p = jnp.transpose(p, (1, 3, 2, 0, 4, 5))       # (B, T1, C, k*k, Ho, Wo)
    return p.reshape(B, T1, C * k * k, Ho * Wo), (Ho, Wo)


# ---------------------------------------------------------------------------
# Branch 1: fused (1,k,k) conv + InstanceNorm3d + ReLU
# ---------------------------------------------------------------------------
def _spatial_branch(xp, w_sp, b_sp, k, s):
    """xp: (B, C_in, T1, Hp, W) f32 (already replication-padded in T and H).
    Returns y: (B, T1, Cp, HW_pad) bf16 (valid region [..., :HWo]) and dims."""
    B, C_in, T1, Hp, W = xp.shape
    C_out = w_sp.shape[0]
    cols, (Ho, Wo) = _im2col_spatial(xp, k, s)     # (B, T1, K1, HWo) f32
    HWo = Ho * Wo
    K1 = C_in * k * k

    Cp = _round_up(C_out, SUBLANE)
    K1p = _round_up(K1, 2 * SUBLANE)               # bf16 sublane packing (16)
    hw_tile = min(_round_up(HWo, LANE), MAX_HW_TILE)
    HW_pad = _round_up(HWo, hw_tile)
    n_hw = HW_pad // hw_tile
    needs_mask = HW_pad != HWo
    inv_n = 1.0 / float(T1 * HWo)

    cols = jnp.pad(cols, ((0, 0), (0, 0), (0, K1p - K1),
                          (0, HW_pad - HWo))).astype(jnp.bfloat16)
    w2d = jnp.pad(w_sp.reshape(C_out, K1),
                  ((0, Cp - C_out), (0, K1p - K1))).astype(jnp.bfloat16)
    b2d = jnp.pad(b_sp.reshape(C_out, 1),
                  ((0, Cp - C_out), (0, 0))).astype(jnp.float32)

    def kernel(w_ref, b_ref, c_ref, o_ref, sum_ref, sq_ref):
        t = pl.program_id(1)
        j = pl.program_id(2)

        @pl.when((t == 0) & (j == 0))
        def _():
            sum_ref[...] = jnp.zeros_like(sum_ref)
            sq_ref[...] = jnp.zeros_like(sq_ref)

        # conv tile: (Cp, K1p) @ (K1p, hw_tile) on the MXU, f32 accumulation
        y = jnp.dot(w_ref[...], c_ref[0, 0],
                    preferred_element_type=jnp.float32)
        y = y + b_ref[...]
        if needs_mask:   # keep padded lanes out of the statistics
            lane = lax.broadcasted_iota(jnp.int32, y.shape, 1)
            y = jnp.where(j * hw_tile + lane < HWo, y, 0.0)

        # single-pass InstanceNorm statistics (sum and sum of squares)
        sum_ref[...] += jnp.sum(y, axis=1, keepdims=True)
        sq_ref[...] += jnp.sum(y * y, axis=1, keepdims=True)
        o_ref[0, t, :, pl.ds(pl.multiple_of(j * hw_tile, LANE), hw_tile)] = (
            y.astype(o_ref.dtype))

        # normalize + ReLU the whole VMEM-resident per-batch block once
        @pl.when((t == pl.num_programs(1) - 1) & (j == pl.num_programs(2) - 1))
        def _():
            mean = sum_ref[...] * inv_n
            var = sq_ref[...] * inv_n - mean * mean
            scale = lax.rsqrt(var + 1e-5)
            shift = -mean * scale
            o_ref[0] = jnp.maximum(
                o_ref[0].astype(jnp.float32) * scale[None] + shift[None],
                0.0).astype(o_ref.dtype)

    y = pl.pallas_call(
        kernel,
        out_shape=jax.ShapeDtypeStruct((B, T1, Cp, HW_pad), jnp.bfloat16),
        grid=(B, T1, n_hw),
        in_specs=[
            pl.BlockSpec((Cp, K1p), lambda b, t, j: (0, 0)),
            pl.BlockSpec((Cp, 1), lambda b, t, j: (0, 0)),
            pl.BlockSpec((1, 1, K1p, hw_tile), lambda b, t, j: (b, t, 0, j)),
        ],
        out_specs=pl.BlockSpec((1, T1, Cp, HW_pad), lambda b, t, j: (b, 0, 0, 0)),
        scratch_shapes=[pltpu.VMEM((Cp, 1), jnp.float32),
                        pltpu.VMEM((Cp, 1), jnp.float32)],
        compiler_params=pltpu.CompilerParams(
            dimension_semantics=("parallel", "arbitrary", "arbitrary"),
            vmem_limit_bytes=VMEM_LIMIT),
    )(w2d, b2d, cols)
    return y, (Ho, Wo, Cp, HWo)


# ---------------------------------------------------------------------------
# Branch 2: fused (k,1,1) conv + InstanceNorm3d + ReLU  (no im2col)
# ---------------------------------------------------------------------------
def _temporal_branch(y5, w_t, b_t, k, s):
    """y5: (B, T1, Cp, Ho, Wp) bf16 (W already replication-padded, channels
    zero-padded to Cp).  Returns z: (B, T2, Cp, HWt_pad) f32 and dims."""
    B, T1, Cp, Ho, Wp = y5.shape
    C_out = w_t.shape[0]
    T2 = (T1 - k) // s + 1
    HWt = Ho * Wp
    hw_tile = min(_round_up(HWt, LANE), MAX_HW_TILE)
    HWt_pad = _round_up(HWt, hw_tile)
    n_hw = HWt_pad // hw_tile
    needs_mask = HWt_pad != HWt
    inv_n = 1.0 / float(T2 * HWt)

    yflat = jnp.pad(y5.reshape(B, T1, Cp, HWt),
                    ((0, 0), (0, 0), (0, 0), (0, HWt_pad - HWt)))
    wt_taps = jnp.transpose(w_t[:, :, :, 0, 0], (2, 0, 1))    # (k, Cout, Cout)
    wt_taps = jnp.pad(wt_taps, ((0, 0), (0, Cp - C_out),
                                (0, Cp - C_out))).astype(jnp.bfloat16)
    b2d = jnp.pad(b_t.reshape(C_out, 1),
                  ((0, Cp - C_out), (0, 0))).astype(jnp.float32)

    def kernel(w_ref, b_ref, y_ref, o_ref, sum_ref, sq_ref):
        j = pl.program_id(1)
        t2 = pl.program_id(2)

        @pl.when((j == 0) & (t2 == 0))
        def _():
            sum_ref[...] = jnp.zeros_like(sum_ref)
            sq_ref[...] = jnp.zeros_like(sq_ref)

        # k-tap temporal conv: shifted (Cp, hw_tile) slabs taken from the
        # VMEM-resident (T1, Cp, hw_tile) window — no im2col in HBM.
        ywin = y_ref[0, pl.ds(t2 * s, k)]                     # (k, Cp, hw_tile)
        acc = jnp.dot(w_ref[0], ywin[0], preferred_element_type=jnp.float32)
        for kt in range(1, k):
            acc = acc + jnp.dot(w_ref[kt], ywin[kt],
                                preferred_element_type=jnp.float32)
        acc = acc + b_ref[...]
        if needs_mask:
            lane = lax.broadcasted_iota(jnp.int32, acc.shape, 1)
            acc = jnp.where(j * hw_tile + lane < HWt, acc, 0.0)

        sum_ref[...] += jnp.sum(acc, axis=1, keepdims=True)
        sq_ref[...] += jnp.sum(acc * acc, axis=1, keepdims=True)
        o_ref[0, t2, :, pl.ds(pl.multiple_of(j * hw_tile, LANE), hw_tile)] = acc

        @pl.when((j == pl.num_programs(1) - 1) & (t2 == pl.num_programs(2) - 1))
        def _():
            mean = sum_ref[...] * inv_n
            var = sq_ref[...] * inv_n - mean * mean
            scale = lax.rsqrt(var + 1e-5)
            shift = -mean * scale
            o_ref[0] = jnp.maximum(o_ref[0] * scale[None] + shift[None], 0.0)

    z = pl.pallas_call(
        kernel,
        out_shape=jax.ShapeDtypeStruct((B, T2, Cp, HWt_pad), jnp.float32),
        grid=(B, n_hw, T2),
        in_specs=[
            pl.BlockSpec((k, Cp, Cp), lambda b, j, t: (0, 0, 0)),
            pl.BlockSpec((Cp, 1), lambda b, j, t: (0, 0)),
            pl.BlockSpec((1, T1, Cp, hw_tile), lambda b, j, t: (b, 0, 0, j)),
        ],
        out_specs=pl.BlockSpec((1, T2, Cp, HWt_pad), lambda b, j, t: (b, 0, 0, 0)),
        scratch_shapes=[pltpu.VMEM((Cp, 1), jnp.float32),
                        pltpu.VMEM((Cp, 1), jnp.float32)],
        compiler_params=pltpu.CompilerParams(
            dimension_semantics=("parallel", "arbitrary", "arbitrary"),
            vmem_limit_bytes=VMEM_LIMIT),
    )(wt_taps, b2d, yflat)
    return z, (T2, HWt)


# ---------------------------------------------------------------------------
# STConv3d forward (Pallas-backed)
# ---------------------------------------------------------------------------
def stconv3d_forward(x, params, kernel_size, stride, padding):
    k, s, p = kernel_size, stride, padding
    w_sp, b_sp = params["w_spatial"], params["b_spatial"]
    w_t, b_t = params["w_temporal"], params["b_temporal"]
    C_out = w_sp.shape[0]
    B = x.shape[0]

    # Spatial branch: ReplicationPad3d((0,0,p,p,p,p)) pads H and T only.
    xp = jnp.pad(x, ((0, 0), (0, 0), (p, p), (p, p), (0, 0)), mode="edge")
    T1 = xp.shape[2]
    y, (Ho, Wo, Cp, HWo) = _spatial_branch(xp, w_sp, b_sp, k, s)

    # Temporal branch: ReplicationPad3d((p,p,0,0,0,0)) pads W only.
    # TODO(synk): fuse this reshape/edge-pad and the temporal kernel with the
    # spatial kernel to remove the intermediate HBM round-trip of y entirely.
    y5 = y[:, :, :, :HWo].reshape(B, T1, Cp, Ho, Wo)
    y5 = jnp.pad(y5, ((0, 0), (0, 0), (0, 0), (0, 0), (p, p)), mode="edge")
    Wp = Wo + 2 * p
    z, (T2, HWt) = _temporal_branch(y5, w_t, b_t, k, s)

    z = z[:, :, :C_out, :HWt].reshape(B, T2, C_out, Ho, Wp)
    return jnp.transpose(z, (0, 2, 1, 3, 4))   # NCDHW: (B, C_out, T2, Ho, Wp)


# ---------------------------------------------------------------------------
# Pure-JAX reference (f32, XLA convs) for the correctness check
# ---------------------------------------------------------------------------
def stconv3d_reference(x, params, kernel_size, stride, padding):
    k, s, p = kernel_size, stride, padding
    dn = ("NCDHW", "OIDHW", "NCDHW")

    def inorm_relu(y):
        m = jnp.mean(y, axis=(2, 3, 4), keepdims=True)
        v = jnp.mean(jnp.square(y - m), axis=(2, 3, 4), keepdims=True)
        return jnp.maximum((y - m) * lax.rsqrt(v + 1e-5), 0.0)

    xp = jnp.pad(x, ((0, 0), (0, 0), (p, p), (p, p), (0, 0)), mode="edge")
    y = lax.conv_general_dilated(xp, params["w_spatial"], (1, s, s), "VALID",
                                 dimension_numbers=dn,
                                 precision=lax.Precision.HIGHEST)
    y = inorm_relu(y + params["b_spatial"][None, :, None, None, None])

    yp = jnp.pad(y, ((0, 0), (0, 0), (0, 0), (0, 0), (p, p)), mode="edge")
    z = lax.conv_general_dilated(yp, params["w_temporal"], (s, 1, 1), "VALID",
                                 dimension_numbers=dn,
                                 precision=lax.Precision.HIGHEST)
    return inorm_relu(z + params["b_temporal"][None, :, None, None, None])


# ---------------------------------------------------------------------------
# Deterministic parameter init (PyTorch Conv3d-style uniform bounds)
# ---------------------------------------------------------------------------
def init_params(key, in_channels, out_channels, kernel_size):
    k = kernel_size
    k_sp_w, k_sp_b, k_t_w, k_t_b = jax.random.split(key, 4)
    bnd_sp = 1.0 / jnp.sqrt(in_channels * 1 * k * k)
    bnd_t = 1.0 / jnp.sqrt(out_channels * k * 1 * 1)
    return {
        "w_spatial": jax.random.uniform(k_sp_w, (out_channels, in_channels, 1, k, k),
                                        jnp.float32, -bnd_sp, bnd_sp),
        "b_spatial": jax.random.uniform(k_sp_b, (out_channels,), jnp.float32,
                                        -bnd_sp, bnd_sp),
        "w_temporal": jax.random.uniform(k_t_w, (out_channels, out_channels, k, 1, 1),
                                         jnp.float32, -bnd_t, bnd_t),
        "b_temporal": jax.random.uniform(k_t_b, (out_channels,), jnp.float32,
                                         -bnd_t, bnd_t),
    }


if __name__ == "__main__":
    key = jax.random.PRNGKey(0)
    k_x, k_p = jax.random.split(key)

    B, C_in, C_out = 2, 4, 8
    T, H, W = 8, 16, 16
    kernel_size, stride, padding = 3, 1, 1

    x = jax.random.normal(k_x, (B, C_in, T, H, W), jnp.float32)
    params = init_params(k_p, C_in, C_out, kernel_size)

    fwd = jax.jit(lambda xx, pp: stconv3d_forward(xx, pp, kernel_size,
                                                  stride, padding))
    out = jax.block_until_ready(fwd(x, params))

    ref = jax.block_until_ready(
        stconv3d_reference(x, params, kernel_size, stride, padding))

    assert out.shape == (B, C_out, T, H, W), out.shape
    assert bool(jnp.all(jnp.isfinite(out)))
    # bf16 MXU inputs (f32 accumulation/stats) vs f32 XLA reference.
    assert bool(jnp.allclose(out, ref, atol=5e-2, rtol=5e-2)), (
        float(jnp.max(jnp.abs(out - ref))))

    print("KERNEL_OK")
</pallas_src>

<mosaic_0001>
module attributes {stable_mosaic.version = 11 : i64} {
  func.func @kernel(%arg0: i32, %arg1: i32, %arg2: i32, %arg3: memref<8x48xbf16, #tpu.memory_space<vmem>>, %arg4: memref<8x1xf32, #tpu.memory_space<vmem>>, %arg5: memref<1x1x48x256xbf16, #tpu.memory_space<vmem>>, %arg6: memref<1x10x8x256xbf16, #tpu.memory_space<vmem>>, %arg7: memref<8x1xf32, #tpu.memory_space<vmem>>, %arg8: memref<8x1xf32, #tpu.memory_space<vmem>>) attributes {dimension_semantics = [#tpu.dimension_semantics<parallel>, #tpu.dimension_semantics<arbitrary>, #tpu.dimension_semantics<arbitrary>], iteration_bounds = array<i64: 2, 10, 1>, scalar_prefetch = 0 : i64, scratch_operands = 2 : i64, tpu.core_type = #tpu.core_type<tc>, window_params = [{pipeline_mode = #tpu.pipeline_mode<synchronous>, transform_indices = @transform_0, window_bounds = array<i64: 8, 48>}, {pipeline_mode = #tpu.pipeline_mode<synchronous>, transform_indices = @transform_1, window_bounds = array<i64: 8, 1>}, {transform_indices = @transform_2, window_bounds = array<i64: 1, 1, 48, 256>}, {transform_indices = @transform_3, window_bounds = array<i64: 1, 10, 8, 256>}]} {
    %c0_i32 = arith.constant 0 : i32
    %0 = arith.cmpi eq, %arg1, %c0_i32 : i32
    %c0_i32_0 = arith.constant 0 : i32
    %1 = arith.cmpi eq, %arg2, %c0_i32_0 : i32
    %2 = arith.andi %0, %1 : i1
    %3 = arith.extui %2 : i1 to i32
    %c0_i32_1 = arith.constant 0 : i32
    %4 = arith.cmpi ne, %3, %c0_i32_1 : i32
    scf.if %4 {
      %cst_25 = arith.constant 0.000000e+00 : f32
      %44 = vector.broadcast %cst_25 : f32 to vector<8x1xf32>
      %c0_26 = arith.constant 0 : index
      %c0_27 = arith.constant 0 : index
      %45 = vector.load %arg7[%c0_26, %c0_27] : memref<8x1xf32, #tpu.memory_space<vmem>>, vector<8x1xf32>
      tpu.vector_store %arg7[%c0_26, %c0_27], %44 {strides = array<i32>} : memref<8x1xf32, #tpu.memory_space<vmem>>, vector<8x1xf32>,
      %cst_28 = arith.constant 0.000000e+00 : f32
      %46 = vector.broadcast %cst_28 : f32 to vector<8x1xf32>
      %c0_29 = arith.constant 0 : index
      %c0_30 = arith.constant 0 : index
      %47 = vector.load %arg8[%c0_29, %c0_30] : memref<8x1xf32, #tpu.memory_space<vmem>>, vector<8x1xf32>
      tpu.vector_store %arg8[%c0_29, %c0_30], %46 {strides = array<i32>} : memref<8x1xf32, #tpu.memory_space<vmem>>, vector<8x1xf32>,
    } else {
    }
    %c0 = arith.constant 0 : index
    %c0_2 = arith.constant 0 : index
    %5 = vector.load %arg3[%c0, %c0_2] : memref<8x48xbf16, #tpu.memory_space<vmem>>, vector<8x48xbf16>
    %c0_3 = arith.constant 0 : index
    %c0_4 = arith.constant 0 : index
    %c0_5 = arith.constant 0 : index
    %c0_6 = arith.constant 0 : index
    %6 = vector.load %arg5[%c0_3, %c0_4, %c0_5, %c0_6] : memref<1x1x48x256xbf16, #tpu.memory_space<vmem>>, vector<1x1x48x256xbf16>
    %7 = vector.shape_cast %6 : vector<1x1x48x256xbf16> to vector<48x256xbf16>
    %cst = arith.constant dense<0.000000e+00> : vector<8x256xf32>
    %8 = tpu.matmul %5, %7, %cst {dimension_numbers = #tpu.dot_dimension_numbers<[1], [0], [0], [1], [0, 0, 1, 1], [], []>} : vector<8x48xbf16>, vector<48x256xbf16>, vector<8x256xf32> -> vector<8x256xf32>
    %c0_7 = arith.constant 0 : index
    %c0_8 = arith.constant 0 : index
    %9 = vector.load %arg4[%c0_7, %c0_8] : memref<8x1xf32, #tpu.memory_space<vmem>>, vector<8x1xf32>
    %10 = vector.broadcast %9 : vector<8x1xf32> to vector<8x256xf32>
    %11 = arith.addf %8, %10 : vector<8x256xf32>
    %12 = tpu.iota {dimensions = array<i32: 1>} : vector<8x256xi32>
    %c256_i32 = arith.constant 256 : i32
    %13 = arith.muli %arg2, %c256_i32 : i32
    %14 = vector.broadcast %13 : i32 to vector<8x256xi32>
    %15 = arith.addi %14, %12 : vector<8x256xi32>
    %c224_i32 = arith.constant 224 : i32
    %16 = vector.broadcast %c224_i32 : i32 to vector<8x256xi32>
    %17 = arith.cmpi slt, %15, %16 : vector<8x256xi32>
    %cst_9 = arith.constant 0.000000e+00 : f32
    %18 = vector.broadcast %cst_9 : f32 to vector<8x256xf32>
    %19 = arith.select %17, %11, %18 : vector<8x256xi1>, vector<8x256xf32>
    %c0_10 = arith.constant 0 : index
    %c0_11 = arith.constant 0 : index
    %20 = vector.load %arg7[%c0_10, %c0_11] : memref<8x1xf32, #tpu.memory_space<vmem>>, vector<8x1xf32>
    %cst_12 = arith.constant dense<0.000000e+00> : vector<8xf32>
    %21 = vector.multi_reduction <add>, %19, %cst_12 [1] : vector<8x256xf32> to vector<8xf32>
    %22 = vector.shape_cast %21 : vector<8xf32> to vector<8x1xf32>
    %23 = arith.addf %20, %22 : vector<8x1xf32>
    %c0_13 = arith.constant 0 : index
    %c0_14 = arith.constant 0 : index
    %24 = vector.load %arg7[%c0_13, %c0_14] : memref<8x1xf32, #tpu.memory_space<vmem>>, vector<8x1xf32>
    tpu.vector_store %arg7[%c0_13, %c0_14], %23 {strides = array<i32>} : memref<8x1xf32, #tpu.memory_space<vmem>>, vector<8x1xf32>,
    %c0_15 = arith.constant 0 : index
    %c0_16 = arith.constant 0 : index
    %25 = vector.load %arg8[%c0_15, %c0_16] : memref<8x1xf32, #tpu.memory_space<vmem>>, vector<8x1xf32>
    %26 = arith.mulf %19, %19 : vector<8x256xf32>
    %cst_17 = arith.constant dense<0.000000e+00> : vector<8xf32>
    %27 = vector.multi_reduction <add>, %26, %cst_17 [1] : vector<8x256xf32> to vector<8xf32>
    %28 = vector.shape_cast %27 : vector<8xf32> to vector<8x1xf32>
    %29 = arith.addf %25, %28 : vector<8x1xf32>
    %c0_18 = arith.constant 0 : index
    %c0_19 = arith.constant 0 : index
    %30 = vector.load %arg8[%c0_18, %c0_19] : memref<8x1xf32, #tpu.memory_space<vmem>>, vector<8x1xf32>
    tpu.vector_store %arg8[%c0_18, %c0_19], %29 {strides = array<i32>} : memref<8x1xf32, #tpu.memory_space<vmem>>, vector<8x1xf32>,
    %31 = arith.truncf %19 : vector<8x256xf32> to vector<8x256xbf16>
    %c256_i32_20 = arith.constant 256 : i32
    %32 = arith.muli %arg2, %c256_i32_20 : i32
    %33 = tpu.assume_multiple %32, 128 : i32
    %c0_21 = arith.constant 0 : index
    %34 = arith.index_cast %arg1 : i32 to index
    %c0_22 = arith.constant 0 : index
    %35 = arith.index_cast %33 : i32 to index
    %36 = vector.load %arg6[%c0_21, %34, %c0_22, %35] : memref<1x10x8x256xbf16, #tpu.memory_space<vmem>>, vector<1x1x8x256xbf16>
    %37 = vector.shape_cast %36 : vector<1x1x8x256xbf16> to vector<8x256xbf16>
    %38 = vector.shape_cast %31 : vector<8x256xbf16> to vector<1x1x8x256xbf16>
    tpu.vector_store %arg6[%c0_21, %34, %c0_22, %35], %38 {strides = array<i32>} : memref<1x10x8x256xbf16, #tpu.memory_space<vmem>>, vector<1x1x8x256xbf16>,
    %c9_i32 = arith.constant 9 : i32
    %39 = arith.cmpi eq, %arg1, %c9_i32 : i32
    %c0_i32_23 = arith.constant 0 : i32
    %40 = arith.cmpi eq, %arg2, %c0_i32_23 : i32
    %41 = arith.andi %39, %40 : i1
    %42 = arith.extui %41 : i1 to i32
    %c0_i32_24 = arith.constant 0 : i32
    %43 = arith.cmpi ne, %42, %c0_i32_24 : i32
    scf.if %43 {
      %c0_25 = arith.constant 0 : index
      %c0_26 = arith.constant 0 : index
      %44 = vector.load %arg7[%c0_25, %c0_26] : memref<8x1xf32, #tpu.memory_space<vmem>>, vector<8x1xf32>
      %cst_27 = arith.constant 4.46428574E-4 : f32
      %45 = vector.broadcast %cst_27 : f32 to vector<8x1xf32>
      %46 = arith.mulf %44, %45 : vector<8x1xf32>
      %c0_28 = arith.constant 0 : index
      %c0_29 = arith.constant 0 : index
      %47 = vector.load %arg8[%c0_28, %c0_29] : memref<8x1xf32, #tpu.memory_space<vmem>>, vector<8x1xf32>
      %cst_30 = arith.constant 4.46428574E-4 : f32
      %48 = vector.broadcast %cst_30 : f32 to vector<8x1xf32>
      %49 = arith.mulf %47, %48 : vector<8x1xf32>
      %50 = arith.mulf %46, %46 : vector<8x1xf32>
      %51 = arith.subf %49, %50 : vector<8x1xf32>
      %cst_31 = arith.constant 9.99999974E-6 : f32
      %52 = vector.broadcast %cst_31 : f32 to vector<8x1xf32>
      %53 = arith.addf %51, %52 : vector<8x1xf32>
      %54 = math.rsqrt %53 : vector<8x1xf32>
      %cst_32 = arith.constant 0.000000e+00 : f32
      %55 = vector.broadcast %cst_32 : f32 to vector<8x1xf32>
      %56 = arith.subf %55, %46 : vector<8x1xf32>
      %57 = arith.mulf %56, %54 : vector<8x1xf32>
      %c0_33 = arith.constant 0 : index
      %c0_34 = arith.constant 0 : index
      %c0_35 = arith.constant 0 : index
      %c0_36 = arith.constant 0 : index
      %58 = vector.load %arg6[%c0_33, %c0_34, %c0_35, %c0_36] : memref<1x10x8x256xbf16, #tpu.memory_space<vmem>>, vector<1x10x8x256xbf16>
      %59 = vector.shape_cast %58 : vector<1x10x8x256xbf16> to vector<10x8x256xbf16>
      %60 = arith.extf %59 : vector<10x8x256xbf16> to vector<10x8x256xf32>
      %61 = vector.shape_cast %54 : vector<8x1xf32> to vector<1x8x1xf32>
      %62 = vector.broadcast %61 : vector<1x8x1xf32> to vector<10x8x256xf32>
      %63 = arith.mulf %60, %62 : vector<10x8x256xf32>
      %64 = vector.shape_cast %57 : vector<8x1xf32> to vector<1x8x1xf32>
      %65 = vector.broadcast %64 : vector<1x8x1xf32> to vector<10x8x256xf32>
      %66 = arith.addf %63, %65 : vector<10x8x256xf32>
      %cst_37 = arith.constant 0.000000e+00 : f32
      %67 = vector.broadcast %cst_37 : f32 to vector<10x8x256xf32>
      %68 = arith.maximumf %66, %67 : vector<10x8x256xf32>
      %69 = arith.truncf %68 : vector<10x8x256xf32> to vector<10x8x256xbf16>
      %c0_38 = arith.constant 0 : index
      %c0_39 = arith.constant 0 : index
      %c0_40 = arith.constant 0 : index
      %c0_41 = arith.constant 0 : index
      %70 = vector.load %arg6[%c0_38, %c0_39, %c0_40, %c0_41] : memref<1x10x8x256xbf16, #tpu.memory_space<vmem>>, vector<1x10x8x256xbf16>
      %71 = vector.shape_cast %70 : vector<1x10x8x256xbf16> to vector<10x8x256xbf16>
      %72 = vector.shape_cast %69 : vector<10x8x256xbf16> to vector<1x10x8x256xbf16>
      tpu.vector_store %arg6[%c0_38, %c0_39, %c0_40, %c0_41], %72 {strides = array<i32>} : memref<1x10x8x256xbf16, #tpu.memory_space<vmem>>, vector<1x10x8x256xbf16>,
    } else {
    }
    return
  }
  func.func @transform_0(%arg0: i32, %arg1: i32, %arg2: i32) -> (i32, i32) {
    %c0_i32 = arith.constant 0 : i32
    %c0_i32_0 = arith.constant 0 : i32
    %c0_i32_1 = arith.constant 0 : i32
    return %c0_i32, %c0_i32_0 : i32, i32
  }
  func.func @transform_1(%arg0: i32, %arg1: i32, %arg2: i32) -> (i32, i32) {
    %c0_i32 = arith.constant 0 : i32
    %c0_i32_0 = arith.constant 0 : i32
    %c0_i32_1 = arith.constant 0 : i32
    return %c0_i32, %c0_i32_0 : i32, i32
  }
  func.func @transform_2(%arg0: i32, %arg1: i32, %arg2: i32) -> (i32, i32, i32, i32) {
    %c0_i32 = arith.constant 0 : i32
    %c0_i32_0 = arith.constant 0 : i32
    return %arg0, %arg1, %c0_i32, %arg2 : i32, i32, i32, i32
  }
  func.func @transform_3(%arg0: i32, %arg1: i32, %arg2: i32) -> (i32, i32, i32, i32) {
    %c0_i32 = arith.constant 0 : i32
    %c0_i32_0 = arith.constant 0 : i32
    %c0_i32_1 = arith.constant 0 : i32
    %c0_i32_2 = arith.constant 0 : i32
    return %arg0, %c0_i32, %c0_i32_0, %c0_i32_1 : i32, i32, i32, i32
  }
}

module attributes {stable_mosaic.version = 11 : i64} {
  func.func @kernel(%arg0: i32, %arg1: i32, %arg2: i32, %arg3: memref<3x8x8xbf16, #tpu.memory_space<vmem>>, %arg4: memref<8x1xf32, #tpu.memory_space<vmem>>, %arg5: memref<1x10x8x256xbf16, #tpu.memory_space<vmem>>, %arg6: memref<1x8x8x256xf32, #tpu.memory_space<vmem>>, %arg7: memref<8x1xf32, #tpu.memory_space<vmem>>, %arg8: memref<8x1xf32, #tpu.memory_space<vmem>>) attributes {dimension_semantics = [#tpu.dimension_semantics<parallel>, #tpu.dimension_semantics<arbitrary>, #tpu.dimension_semantics<arbitrary>], iteration_bounds = array<i64: 2, 1, 8>, scalar_prefetch = 0 : i64, scratch_operands = 2 : i64, tpu.core_type = #tpu.core_type<tc>, window_params = [{pipeline_mode = #tpu.pipeline_mode<synchronous>, transform_indices = @transform_0, window_bounds = array<i64: 3, 8, 8>}, {pipeline_mode = #tpu.pipeline_mode<synchronous>, transform_indices = @transform_1, window_bounds = array<i64: 8, 1>}, {transform_indices = @transform_2, window_bounds = array<i64: 1, 10, 8, 256>}, {transform_indices = @transform_3, window_bounds = array<i64: 1, 8, 8, 256>}]} {
    %c0_i32 = arith.constant 0 : i32
    %0 = arith.cmpi eq, %arg1, %c0_i32 : i32
    %c0_i32_0 = arith.constant 0 : i32
    %1 = arith.cmpi eq, %arg2, %c0_i32_0 : i32
    %2 = arith.andi %0, %1 : i1
    %3 = arith.extui %2 : i1 to i32
    %c0_i32_1 = arith.constant 0 : i32
    %4 = arith.cmpi ne, %3, %c0_i32_1 : i32
    scf.if %4 {
      %cst_29 = arith.constant 0.000000e+00 : f32
      %52 = vector.broadcast %cst_29 : f32 to vector<8x1xf32>
      %c0_30 = arith.constant 0 : index
      %c0_31 = arith.constant 0 : index
      %53 = vector.load %arg7[%c0_30, %c0_31] : memref<8x1xf32, #tpu.memory_space<vmem>>, vector<8x1xf32>
      tpu.vector_store %arg7[%c0_30, %c0_31], %52 {strides = array<i32>} : memref<8x1xf32, #tpu.memory_space<vmem>>, vector<8x1xf32>,
      %cst_32 = arith.constant 0.000000e+00 : f32
      %54 = vector.broadcast %cst_32 : f32 to vector<8x1xf32>
      %c0_33 = arith.constant 0 : index
      %c0_34 = arith.constant 0 : index
      %55 = vector.load %arg8[%c0_33, %c0_34] : memref<8x1xf32, #tpu.memory_space<vmem>>, vector<8x1xf32>
      tpu.vector_store %arg8[%c0_33, %c0_34], %54 {strides = array<i32>} : memref<8x1xf32, #tpu.memory_space<vmem>>, vector<8x1xf32>,
    } else {
    }
    %c1_i32 = arith.constant 1 : i32
    %5 = arith.muli %arg2, %c1_i32 : i32
    %c0 = arith.constant 0 : index
    %6 = arith.index_cast %5 : i32 to index
    %c0_2 = arith.constant 0 : index
    %c0_3 = arith.constant 0 : index
    %7 = vector.load %arg5[%c0, %6, %c0_2, %c0_3] : memref<1x10x8x256xbf16, #tpu.memory_space<vmem>>, vector<1x3x8x256xbf16>
    %8 = vector.shape_cast %7 : vector<1x3x8x256xbf16> to vector<3x8x256xbf16>
    %c0_4 = arith.constant 0 : index
    %c0_5 = arith.constant 0 : index
    %c0_6 = arith.constant 0 : index
    %9 = vector.load %arg3[%c0_4, %c0_5, %c0_6] : memref<3x8x8xbf16, #tpu.memory_space<vmem>>, vector<1x8x8xbf16>
    %10 = vector.shape_cast %9 : vector<1x8x8xbf16> to vector<8x8xbf16>
    %11 = vector.extract_strided_slice %8 {offsets = [0, 0, 0], sizes = [1, 8, 256], strides = [1, 1, 1]} : vector<3x8x256xbf16> to vector<1x8x256xbf16>
    %12 = vector.shape_cast %11 : vector<1x8x256xbf16> to vector<8x256xbf16>
    %cst = arith.constant dense<0.000000e+00> : vector<8x256xf32>
    %13 = tpu.matmul %10, %12, %cst {dimension_numbers = #tpu.dot_dimension_numbers<[1], [0], [0], [1], [0, 0, 1, 1], [], []>} : vector<8x8xbf16>, vector<8x256xbf16>, vector<8x256xf32> -> vector<8x256xf32>
    %c1 = arith.constant 1 : index
    %c0_7 = arith.constant 0 : index
    %c0_8 = arith.constant 0 : index
    %14 = vector.load %arg3[%c1, %c0_7, %c0_8] : memref<3x8x8xbf16, #tpu.memory_space<vmem>>, vector<1x8x8xbf16>
    %15 = vector.shape_cast %14 : vector<1x8x8xbf16> to vector<8x8xbf16>
    %16 = vector.extract_strided_slice %8 {offsets = [1, 0, 0], sizes = [1, 8, 256], strides = [1, 1, 1]} : vector<3x8x256xbf16> to vector<1x8x256xbf16>
    %17 = vector.shape_cast %16 : vector<1x8x256xbf16> to vector<8x256xbf16>
    %cst_9 = arith.constant dense<0.000000e+00> : vector<8x256xf32>
    %18 = tpu.matmul %15, %17, %cst_9 {dimension_numbers = #tpu.dot_dimension_numbers<[1], [0], [0], [1], [0, 0, 1, 1], [], []>} : vector<8x8xbf16>, vector<8x256xbf16>, vector<8x256xf32> -> vector<8x256xf32>
    %19 = arith.addf %13, %18 : vector<8x256xf32>
    %c2 = arith.constant 2 : index
    %c0_10 = arith.constant 0 : index
    %c0_11 = arith.constant 0 : index
    %20 = vector.load %arg3[%c2, %c0_10, %c0_11] : memref<3x8x8xbf16, #tpu.memory_space<vmem>>, vector<1x8x8xbf16>
    %21 = vector.shape_cast %20 : vector<1x8x8xbf16> to vector<8x8xbf16>
    %22 = vector.extract_strided_slice %8 {offsets = [2, 0, 0], sizes = [1, 8, 256], strides = [1, 1, 1]} : vector<3x8x256xbf16> to vector<1x8x256xbf16>
    %23 = vector.shape_cast %22 : vector<1x8x256xbf16> to vector<8x256xbf16>
    %cst_12 = arith.constant dense<0.000000e+00> : vector<8x256xf32>
    %24 = tpu.matmul %21, %23, %cst_12 {dimension_numbers = #tpu.dot_dimension_numbers<[1], [0], [0], [1], [0, 0, 1, 1], [], []>} : vector<8x8xbf16>, vector<8x256xbf16>, vector<8x256xf32> -> vector<8x256xf32>
    %25 = arith.addf %19, %24 : vector<8x256xf32>
    %c0_13 = arith.constant 0 : index
    %c0_14 = arith.constant 0 : index
    %26 = vector.load %arg4[%c0_13, %c0_14] : memref<8x1xf32, #tpu.memory_space<vmem>>, vector<8x1xf32>
    %27 = vector.broadcast %26 : vector<8x1xf32> to vector<8x256xf32>
    %28 = arith.addf %25, %27 : vector<8x256xf32>
    %c0_15 = arith.constant 0 : index
    %c0_16 = arith.constant 0 : index
    %29 = vector.load %arg7[%c0_15, %c0_16] : memref<8x1xf32, #tpu.memory_space<vmem>>, vector<8x1xf32>
    %cst_17 = arith.constant dense<0.000000e+00> : vector<8xf32>
    %30 = vector.multi_reduction <add>, %28, %cst_17 [1] : vector<8x256xf32> to vector<8xf32>
    %31 = vector.shape_cast %30 : vector<8xf32> to vector<8x1xf32>
    %32 = arith.addf %29, %31 : vector<8x1xf32>
    %c0_18 = arith.constant 0 : index
    %c0_19 = arith.constant 0 : index
    %33 = vector.load %arg7[%c0_18, %c0_19] : memref<8x1xf32, #tpu.memory_space<vmem>>, vector<8x1xf32>
    tpu.vector_store %arg7[%c0_18, %c0_19], %32 {strides = array<i32>} : memref<8x1xf32, #tpu.memory_space<vmem>>, vector<8x1xf32>,
    %c0_20 = arith.constant 0 : index
    %c0_21 = arith.constant 0 : index
    %34 = vector.load %arg8[%c0_20, %c0_21] : memref<8x1xf32, #tpu.memory_space<vmem>>, vector<8x1xf32>
    %35 = arith.mulf %28, %28 : vector<8x256xf32>
    %cst_22 = arith.constant dense<0.000000e+00> : vector<8xf32>
    %36 = vector.multi_reduction <add>, %35, %cst_22 [1] : vector<8x256xf32> to vector<8xf32>
    %37 = vector.shape_cast %36 : vector<8xf32> to vector<8x1xf32>
    %38 = arith.addf %34, %37 : vector<8x1xf32>
    %c0_23 = arith.constant 0 : index
    %c0_24 = arith.constant 0 : index
    %39 = vector.load %arg8[%c0_23, %c0_24] : memref<8x1xf32, #tpu.memory_space<vmem>>, vector<8x1xf32>
    tpu.vector_store %arg8[%c0_23, %c0_24], %38 {strides = array<i32>} : memref<8x1xf32, #tpu.memory_space<vmem>>, vector<8x1xf32>,
    %c256_i32 = arith.constant 256 : i32
    %40 = arith.muli %arg1, %c256_i32 : i32
    %41 = tpu.assume_multiple %40, 128 : i32
    %c0_25 = arith.constant 0 : index
    %42 = arith.index_cast %arg2 : i32 to index
    %c0_26 = arith.constant 0 : index
    %43 = arith.index_cast %41 : i32 to index
    %44 = vector.load %arg6[%c0_25, %42, %c0_26, %43] : memref<1x8x8x256xf32, #tpu.memory_space<vmem>>, vector<1x1x8x256xf32>
    %45 = vector.shape_cast %44 : vector<1x1x8x256xf32> to vector<8x256xf32>
    %46 = vector.shape_cast %28 : vector<8x256xf32> to vector<1x1x8x256xf32>
    tpu.vector_store %arg6[%c0_25, %42, %c0_26, %43], %46 {strides = array<i32>} : memref<1x8x8x256xf32, #tpu.memory_space<vmem>>, vector<1x1x8x256xf32>,
    %c0_i32_27 = arith.constant 0 : i32
    %47 = arith.cmpi eq, %arg1, %c0_i32_27 : i32
    %c7_i32 = arith.constant 7 : i32
    %48 = arith.cmpi eq, %arg2, %c7_i32 : i32
    %49 = arith.andi %47, %48 : i1
    %50 = arith.extui %49 : i1 to i32
    %c0_i32_28 = arith.constant 0 : i32
    %51 = arith.cmpi ne, %50, %c0_i32_28 : i32
    scf.if %51 {
      %c0_29 = arith.constant 0 : index
      %c0_30 = arith.constant 0 : index
      %52 = vector.load %arg7[%c0_29, %c0_30] : memref<8x1xf32, #tpu.memory_space<vmem>>, vector<8x1xf32>
      %cst_31 = arith.constant 4.8828125E-4 : f32
      %53 = vector.broadcast %cst_31 : f32 to vector<8x1xf32>
      %54 = arith.mulf %52, %53 : vector<8x1xf32>
      %c0_32 = arith.constant 0 : index
      %c0_33 = arith.constant 0 : index
      %55 = vector.load %arg8[%c0_32, %c0_33] : memref<8x1xf32, #tpu.memory_space<vmem>>, vector<8x1xf32>
      %cst_34 = arith.constant 4.8828125E-4 : f32
      %56 = vector.broadcast %cst_34 : f32 to vector<8x1xf32>
      %57 = arith.mulf %55, %56 : vector<8x1xf32>
      %58 = arith.mulf %54, %54 : vector<8x1xf32>
      %59 = arith.subf %57, %58 : vector<8x1xf32>
      %cst_35 = arith.constant 9.99999974E-6 : f32
      %60 = vector.broadcast %cst_35 : f32 to vector<8x1xf32>
      %61 = arith.addf %59, %60 : vector<8x1xf32>
      %62 = math.rsqrt %61 : vector<8x1xf32>
      %cst_36 = arith.constant 0.000000e+00 : f32
      %63 = vector.broadcast %cst_36 : f32 to vector<8x1xf32>
      %64 = arith.subf %63, %54 : vector<8x1xf32>
      %65 = arith.mulf %64, %62 : vector<8x1xf32>
      %c0_37 = arith.constant 0 : index
      %c0_38 = arith.constant 0 : index
      %c0_39 = arith.constant 0 : index
      %c0_40 = arith.constant 0 : index
      %66 = vector.load %arg6[%c0_37, %c0_38, %c0_39, %c0_40] : memref<1x8x8x256xf32, #tpu.memory_space<vmem>>, vector<1x8x8x256xf32>
      %67 = vector.shape_cast %66 : vector<1x8x8x256xf32> to vector<8x8x256xf32>
      %68 = vector.shape_cast %62 : vector<8x1xf32> to vector<1x8x1xf32>
      %69 = vector.broadcast %68 : vector<1x8x1xf32> to vector<8x8x256xf32>
      %70 = arith.mulf %67, %69 : vector<8x8x256xf32>
      %71 = vector.shape_cast %65 : vector<8x1xf32> to vector<1x8x1xf32>
      %72 = vector.broadcast %71 : vector<1x8x1xf32> to vector<8x8x256xf32>
      %73 = arith.addf %70, %72 : vector<8x8x256xf32>
      %cst_41 = arith.constant 0.000000e+00 : f32
      %74 = vector.broadcast %cst_41 : f32 to vector<8x8x256xf32>
      %75 = arith.maximumf %73, %74 : vector<8x8x256xf32>
      %c0_42 = arith.constant 0 : index
      %c0_43 = arith.constant 0 : index
      %c0_44 = arith.constant 0 : index
      %c0_45 = arith.constant 0 : index
      %76 = vector.load %arg6[%c0_42, %c0_43, %c0_44, %c0_45] : memref<1x8x8x256xf32, #tpu.memory_space<vmem>>, vector<1x8x8x256xf32>
      %77 = vector.shape_cast %76 : vector<1x8x8x256xf32> to vector<8x8x256xf32>
      %78 = vector.shape_cast %75 : vector<8x8x256xf32> to vector<1x8x8x256xf32>
      tpu.vector_store %arg6[%c0_42, %c0_43, %c0_44, %c0_45], %78 {strides = array<i32>} : memref<1x8x8x256xf32, #tpu.memory_space<vmem>>, vector<1x8x8x256xf32>,
    } else {
    }
    return
  }
  func.func @transform_0(%arg0: i32, %arg1: i32, %arg2: i32) -> (i32, i32, i32) {
    %c0_i32 = arith.constant 0 : i32
    %c0_i32_0 = arith.constant 0 : i32
    %c0_i32_1 = arith.constant 0 : i32
    %c0_i32_2 = arith.constant 0 : i32
    return %c0_i32, %c0_i32_0, %c0_i32_1 : i32, i32, i32
  }
  func.func @transform_1(%arg0: i32, %arg1: i32, %arg2: i32) -> (i32, i32) {
    %c0_i32 = arith.constant 0 : i32
    %c0_i32_0 = arith.constant 0 : i32
    %c0_i32_1 = arith.constant 0 : i32
    return %c0_i32, %c0_i32_0 : i32, i32
  }
  func.func @transform_2(%arg0: i32, %arg1: i32, %arg2: i32) -> (i32, i32, i32, i32) {
    %c0_i32 = arith.constant 0 : i32
    %c0_i32_0 = arith.constant 0 : i32
    %c0_i32_1 = arith.constant 0 : i32
    return %arg0, %c0_i32, %c0_i32_0, %arg1 : i32, i32, i32, i32
  }
  func.func @transform_3(%arg0: i32, %arg1: i32, %arg2: i32) -> (i32, i32, i32, i32) {
    %c0_i32 = arith.constant 0 : i32
    %c0_i32_0 = arith.constant 0 : i32
    %c0_i32_1 = arith.constant 0 : i32
    %c0_i32_2 = arith.constant 0 : i32
    return %arg0, %c0_i32, %c0_i32_0, %c0_i32_1 : i32, i32, i32, i32
  }
}

</mosaic_0001>

<llo_original>
// kernel: _lambda_.2
$region0: #{_lambda_.2}
  #allocation0 [shape = 'u32[]', space=smem, size = 0x4, offset = 0x4, fixed_abs, tag = 'smem constant byte address 0x4 - core index']
  #allocation1 [shape = 'u32[144,128]{1,0:T(1,128)}', space=vmem, size = 0x12000, scoped, tag = 'internal scratch']
  #allocation2 [shape = 'f32[8,1]{1,0:T(8,128)}', space=vmem, size = 0x1000, scoped, tag = 'scratch operand']
  #allocation3 [shape = 'f32[8,1]{1,0:T(8,128)}', space=vmem, size = 0x1000, scoped, tag = 'scratch operand']
  %s0 = inlined_call_operand.vmem [shape: bf16[8,48], index: 0, kind: input, shape index: {}]
  %s1 = inlined_call_operand.vmem [shape: f32[8,1], index: 1, kind: input, shape index: {}]
  %s2 = inlined_call_operand.vmem [shape: bf16[2,10,48,256], index: 2, kind: input, shape index: {}]
  %s3 = inlined_call_operand.vmem [shape: bf16[2,10,8,256], index: 3, kind: output, shape index: {}]
  %s4 = sld [smem:[#allocation0]]
  $region53: #{_lambda_.2} parent=0
    _
  %s6 = ssub.s32 1, %s4
  %s7 = scalar_select 0, %s6, %s4
  loop: start=0, step=1, limit=22
  $region2: #{_lambda_.2} parent=0 // loop_pre_header
    _
  $region3: #{_lambda_.2} parent=0 // loop_header
    %s9 = sphi 0, %s13
    %p10 = scmp.ge.s32.totalorder %s9, 22
    %s16 = sphi 0, %s35
    %s17 = sphi 0, %s31
    %s18 = sphi 0, %s27
    %s19 = sphi 0, %s16
    %s20 = sphi 0, %s17
    %s21 = sphi 0, %s18
    %s22 = sphi 0, %s19
    %s23 = sphi 0, %s20
    %s24 = sphi 0, %s21
    %s36 = sphi 0, %s36
    %s38 = sphi 0, %s36
    %s39 = sphi 0, %s38
    %s53 = sphi 0, %s39
    %s57 = sphi 0, %s57
    %s59 = sphi 0, %s57
    %s60 = sphi 0, %s59
    %s74 = sphi 0, %s60
    %s84 = sphi 0, %s86
    %s87 = sphi 0, %s84
    %s88 = sphi 0, %s87
    %s104 = sphi 0, %s88
    %s110 = sphi 0, %s112
    %s113 = sphi 0, %s110
    %s114 = sphi 0, %s113
    %s130 = sphi 0, %s114
  $region4: #{_lambda_.2} parent=0 // loop_header_branch
    %12 = sbr.rel (%p10) target = $region8
  $region5: #{_lambda_.2} parent=0 // loop_body
    %s14 = ssub.s32 %s9, 1
    %s15 = ssub.s32 %s9, 2
    %s25 = sadd.s32 1, %s18
    %p26 = scmp.ge.s32.totalorder %s25, 1
    %s27 = scalar_select %p26, 0, %s25
    %s28 = sadd.s32 1, %s17
    %s29 = scalar_select %p26, %s28, %s17
    %p30 = scmp.ge.s32.totalorder %s29, 10
    %s31 = scalar_select %p30, 0, %s29
    %s32 = sadd.s32 1, %s16
    %s33 = scalar_select %p30, %s32, %s16
    %p34 = scmp.ge.s32.totalorder %s33, 2
    %s35 = scalar_select %p34, 0, %s33
    %s37 = sadd.s32 %s36, 1
    %p40 = scmp.eq.s32.totalorder %s9, 19
    %p41 = scmp.ne.s32.totalorder %s36, %s38
    %p42 = scmp.eq.s32.totalorder %s9, 0
    %p43 = por %p41, %p42
    %p44 = scmp.ne.s32.totalorder %s36, %s38
    %p45 = scmp.eq.s32.totalorder %s14, 19
    %p46 = por %p44, %p45
    %p47 = scmp.ne.s32.totalorder %s38, %s39
    %p48 = scmp.eq.s32.totalorder %s14, 0
    %p49 = por %p47, %p48
    %p50 = scmp.ne.s32.totalorder %s38, %s39
    %p51 = scmp.eq.s32.totalorder %s15, 19
    %p52 = por %p50, %p51
    %p54 = scmp.ne.s32.totalorder %s39, %s53
    %p55 = scmp.eq.s32.totalorder %s15, 0
    %p56 = por %p54, %p55
    %s58 = sadd.s32 %s57, 1
    %p61 = scmp.eq.s32.totalorder %s9, 19
    %p62 = scmp.ne.s32.totalorder %s57, %s59
    %p63 = scmp.eq.s32.totalorder %s9, 0
    %p64 = por %p62, %p63
    %p65 = scmp.ne.s32.totalorder %s57, %s59
    %p66 = scmp.eq.s32.totalorder %s14, 19
    %p67 = por %p65, %p66
    %p68 = scmp.ne.s32.totalorder %s59, %s60
    %p69 = scmp.eq.s32.totalorder %s14, 0
    %p70 = por %p68, %p69
    %p71 = scmp.ne.s32.totalorder %s59, %s60
    %p72 = scmp.eq.s32.totalorder %s15, 19
    %p73 = por %p71, %p72
    %p75 = scmp.ne.s32.totalorder %s60, %s74
    %p76 = scmp.eq.s32.totalorder %s15, 0
    %p77 = por %p75, %p76
    %s78 = ssub.s32 %s16, %s35
    %s79 = ssub.s32 %s17, %s31
    %s80 = sor.u32 %s78, %s79
    %s81 = ssub.s32 %s18, %s27
    %s82 = sor.u32 %s80, %s81
    %p83 = scmp.eq.s32.totalorder %s82, 0
    %s85 = sadd.s32 %s84, 1
    %s86 = scalar_select %p83, %s84, %s85
    %p89 = pneg %p83
    %p90 = scmp.eq.s32.totalorder %s9, 19
    %p91 = por %p89, %p90
    %p92 = scmp.ne.s32.totalorder %s84, %s87
    %p93 = scmp.eq.s32.totalorder %s9, 0
    %p94 = por %p92, %p93
    %p95 = scmp.ne.s32.totalorder %s84, %s87
    %p96 = scmp.eq.s32.totalorder %s14, 19
    %p97 = por %p95, %p96
    %p98 = scmp.ne.s32.totalorder %s87, %s88
    %p99 = scmp.eq.s32.totalorder %s14, 0
    %p100 = por %p98, %p99
    %p101 = scmp.ne.s32.totalorder %s87, %s88
    %p102 = scmp.eq.s32.totalorder %s15, 19
    %p103 = por %p101, %p102
    %p105 = scmp.ne.s32.totalorder %s88, %s104
    %p106 = scmp.eq.s32.totalorder %s15, 0
    %p107 = por %p105, %p106
    %s108 = ssub.s32 %s16, %s35
    %p109 = scmp.eq.s32.totalorder %s108, 0
    %s111 = sadd.s32 %s110, 1
    %s112 = scalar_select %p109, %s110, %s111
    %p115 = pneg %p109
    %p116 = scmp.eq.s32.totalorder %s9, 19
    %p117 = por %p115, %p116
    %p118 = scmp.ne.s32.totalorder %s110, %s113
    %p119 = scmp.eq.s32.totalorder %s9, 0
    %p120 = por %p118, %p119
    %p121 = scmp.ne.s32.totalorder %s110, %s113
    %p122 = scmp.eq.s32.totalorder %s14, 19
    %p123 = por %p121, %p122
    %p124 = scmp.ne.s32.totalorder %s113, %s114
    %p125 = scmp.eq.s32.totalorder %s14, 0
    %p126 = por %p124, %p125
    %p127 = scmp.ne.s32.totalorder %s113, %s114
    %p128 = scmp.eq.s32.totalorder %s15, 19
    %p129 = por %p127, %p128
    %p131 = scmp.ne.s32.totalorder %s114, %s130
    %p132 = scmp.eq.s32.totalorder %s15, 0
    %p133 = por %p131, %p132
    %p134 = scmp.le.s32.totalorder 1, %s9
    %p135 = scmp.lt.s32.totalorder %s9, 21
    %p136 = pnand %p134, %p135
    %p137 = pneg %p136
    // Predicated region
    $region9: #{_lambda_.2} parent=5 // pred_check
      _
    $region10: #{_lambda_.2} parent=5 // pred_check_branch
      %139 = sbr.rel (%p136) target = $region12
    $region11: #{_lambda_.2} parent=5 // pred_region
      %s140 = ssub.s32 %s9, 1
      // Predicated region
      $region13: #{_lambda_.2} parent=11 // pred_check
        %p141 = pneg %p49
      $region14: #{_lambda_.2} parent=11 // pred_check_branch
        %143 = sbr.rel (%p141) target = $region16
      $region15: #{_lambda_.2} parent=11 // pred_region
        _
      $region16: #{_lambda_.2} parent=11 // pred_fallthru
        _
      // Predicated region
      $region17: #{_lambda_.2} parent=11 // pred_check
        %p144 = pneg %p70
      $region18: #{_lambda_.2} parent=11 // pred_check_branch
        %146 = sbr.rel (%p144) target = $region20
      $region19: #{_lambda_.2} parent=11 // pred_region
        _
      $region20: #{_lambda_.2} parent=11 // pred_fallthru
        _
    $region12: #{_lambda_.2} parent=5 // pred_fallthru
      _
    %p147 = scmp.lt.s32.totalorder %s9, 20
    // Predicated region
    $region21: #{_lambda_.2} parent=5 // pred_check
      %p148 = pneg %p147
    $region22: #{_lambda_.2} parent=5 // pred_check_branch
      %150 = sbr.rel (%p148) target = $region24
    $region23: #{_lambda_.2} parent=5 // pred_region
      // Predicated region
      $region25: #{_lambda_.2} parent=23 // pred_check
        %p151 = pneg %p94
      $region26: #{_lambda_.2} parent=23 // pred_check_branch
        %153 = sbr.rel (%p151) target = $region28
      $region27: #{_lambda_.2} parent=23 // pred_region
        %s154 = smul.u32 2, %s18
        %p155 = scmp.lt.s32.totalorder %s16, 1
        %s156 = scalar_select %p155, %s16, 1
        %p157 = scmp.lt.s32.totalorder %s17, 9
        %s158 = scalar_select %p157, %s17, 9
        %p159 = scmp.lt.s32.totalorder %s154, 1
        %s160 = scalar_select %p159, %s154, 1
        %s161 = smul.addr %s158, 12
        %s162 = sadd.s32 %s160, %s161
        %s163 = smul.addr %s156, 120
        %s164 = sadd.s32 %s162, %s163
        %s165 = smul.addr %s164, 4
        %s166 = scalar_lea.vmem %s2, %s165
        %s167 = smul.u32 2, %s18
      $region28: #{_lambda_.2} parent=23 // pred_fallthru
        _
    $region24: #{_lambda_.2} parent=5 // pred_fallthru
      _
    %p168 = scmp.le.s32.totalorder 1, %s9
    %p169 = scmp.lt.s32.totalorder %s9, 21
    %p170 = pnand %p168, %p169
    %p171 = pneg %p170
    // Predicated region
    $region29: #{_lambda_.2} parent=5 // pred_check
      _
    $region30: #{_lambda_.2} parent=5 // pred_check_branch
      %173 = sbr.rel (%p170) target = $region32
    $region31: #{_lambda_.2} parent=5 // pred_region
      %s174 = ssub.s32 %s9, 1
      %p175 = pneg %p49
      %p176 = pneg %p46
      %p177 = pneg %p70
      %p178 = pneg %p67
      %s179 = smul.u32 2, %s21
      %p180 = scmp.lt.s32.totalorder %s19, 1
      %s181 = scalar_select %p180, %s19, 1
      %p182 = scmp.lt.s32.totalorder %s20, 9
      %s183 = scalar_select %p182, %s20, 9
      %p184 = scmp.lt.s32.totalorder %s179, 1
      %s185 = scalar_select %p184, %s179, 1
      %s186 = smul.addr %s183, 12
      %s187 = sadd.s32 %s185, %s186
      %s188 = smul.addr %s181, 120
      %s189 = sadd.s32 %s187, %s188
      %s190 = smul.addr %s189, 4
      %s191 = scalar_lea.vmem %s2, %s190
      %p192 = pneg %p100
      %p193 = pneg %p97
      %p194 = pneg %p126
      %p195 = pneg %p123
      %p196 = scmp.lt.s32.totalorder %s19, 1
      %s197 = scalar_select %p196, %s19, 1
      %s198 = smul.addr %s197, 20
      %s199 = smul.addr %s198, 4
      %s200 = scalar_lea.vmem %s3, %s199
      %s201 = smul.u32 2, %s21
      %p202 = scmp.lt.s32.totalorder %s19, 1
      %s203 = scalar_select %p202, %s19, 1
      %p204 = scmp.lt.s32.totalorder %s20, 9
      %s205 = scalar_select %p204, %s20, 9
      %p206 = scmp.lt.s32.totalorder %s201, 1
      %s207 = scalar_select %p206, %s201, 1
      %s208 = smul.addr %s205, 12
      %s209 = sadd.s32 %s207, %s208
      %s210 = smul.addr %s203, 120
      %s211 = sadd.s32 %s209, %s210
      %s212 = smul.addr %s211, 4
      %s213 = scalar_lea.vmem %s2, %s212
      %s214 = smul.u32 2, %s21
      %p215 = scmp.lt.s32.totalorder %s19, 1
      %s216 = scalar_select %p215, %s19, 1
      %s217 = smul.addr %s216, 20
      %s218 = smul.addr %s217, 4
      %s219 = scalar_lea.vmem %s3, %s218
      %p221 = scmp.eq.s32.totalorder %s20, 0
      %p222 = scmp.eq.s32.totalorder %s21, 0
      %p223 = pnand %p221, %p222
      %p224 = pneg %p223
      // Predicated region
      $region33: #{_lambda_.2} parent=31 // pred_check
        _
      $region34: #{_lambda_.2} parent=31 // pred_check_branch
        %226 = sbr.rel (%p223) target = $region36
      $region35: #{_lambda_.2} parent=31 // pred_region
        %vm227 = vcmask 7168
        %228 = vst.msk [vmem:[#allocation2] sm:$0xff] %vm227, 0.0
        %229 = vst.msk [vmem:[#allocation3] sm:$0xff] %vm227, 0.0
      $region36: #{_lambda_.2} parent=31 // pred_fallthru
        _
      %v230 = vld [vmem:[%s0] sm:$0xf]
      %v231 = vld [vmem:[%s213] sm:$0xff]
      %v232 = vld [vmem:[%s213 + $0x8] sm:$0xff]
      %v233 = vld [vmem:[%s213 + $0x10] sm:$0xff]
      %v234 = vld [vmem:[%s213 + $0x18] sm:$0xff]
      %v235 = vld [vmem:[%s213 + $0x20] sm:$0xff]
      %v236 = vld [vmem:[%s213 + $0x28] sm:$0xff]
      %v237 = vld [vmem:[%s1] sm:$0xff]
      %239 = vset.pattern.permute.xlu0 0
      %240 = vperm.xlu0 %239, %v237
      %v241 = vpop.permute.xlu0 %240
      %v249 = vunpack.c.l.b16 %v231
      %v250 = vunpack.c.h.b16 %v231
      %v251 = vunpack.c.l.b16 %v232
      %v252 = vunpack.c.h.b16 %v232
      %v253 = vunpack.c.l.b16 %v233
      %v254 = vunpack.c.h.b16 %v233
      %v255 = vunpack.c.l.b16 %v234
      %v256 = vunpack.c.h.b16 %v234
      %v257 = vunpack.c.l.b16 %v235
      %v258 = vunpack.c.h.b16 %v235
      %v259 = vunpack.c.l.b16 %v236
      %v260 = vunpack.c.h.b16 %v236
      %v261 = vpack.c.b16 %v251, %v249
      %v262 = vpack.c.b16 %v252, %v250
      %v263 = vpack.c.b16 %v255, %v253
      %v264 = vpack.c.b16 %v256, %v254
      %v265 = vpack.c.b16 %v259, %v257
      %v266 = vpack.c.b16 %v260, %v258
      %vm273 = vcmask 392192
      %v275 = vsel %vm273, %v230, 0
      %277 = vmatprep.subr.bf16.mxu0 %v262
      %278 = vmatpush1.bf16.msra.mxu0 %v261
      %279 = vmatprep.subr.bf16.mxu0 %v264
      %280 = vmatpush1.bf16.msra.mxu0 %v263
      %281 = vmatprep.subr.bf16.mxu0 %v266
      %282 = vmatpush1.bf16.msra.mxu0 %v265
      %283 = vmatprep.subr.bf16.mxu0 0
      %284 = vmatpush1.bf16.msra.mxu0 0
      %285 = vmatprep.subr.bf16.mxu0 0
      %286 = vmatpush1.bf16.msra.mxu0 0
      %287 = vmatprep.subr.bf16.mxu0 0
      %288 = vmatpush1.bf16.msra.mxu0 0
      %289 = vmatprep.subr.bf16.mxu0 0
      %290 = vmatpush1.bf16.msra.mxu0 0
      %291 = vmatprep.subr.bf16.mxu0 0
      %292 = vmatpush1.bf16.msra.mxu0 0
      %293 = vmatprep.subr.bf16.mxu0 0
      %294 = vmatpush1.bf16.msra.mxu0 0
      %295 = vmatprep.subr.bf16.mxu0 0
      %296 = vmatpush1.bf16.msra.mxu0 0
      %297 = vmatprep.subr.bf16.mxu0 0
      %298 = vmatpush1.bf16.msra.mxu0 0
      %299 = vmatprep.subr.bf16.mxu0 0
      %300 = vmatpush1.bf16.msra.mxu0 0
      %301 = vmatprep.subr.bf16.mxu0 0
      %302 = vmatpush1.bf16.msra.mxu0 0
      %303 = vmatprep.subr.bf16.mxu0 0
      %304 = vmatpush1.bf16.msra.mxu0 0
      %305 = vmatprep.subr.bf16.mxu0 0
      %306 = vmatpush1.bf16.msra.mxu0 0
      %307 = vmatprep.subr.bf16.mxu0 0
      %308 = vmatpush1.bf16.msra.mxu0 0
      %309 = vmatprep.mubr.bf16.mxu0 0
      %310 = vmatmul.mubr.bf16.gmra.mrb[0].mxu0 %v275
      %v311 = vpop.f32.mrb[0].mxu0
      %v312 = vadd.f32 %v241, %v311
      %v313 = vpop.f32.mrb[0].mxu0
      %v314 = vadd.f32 %v241, %v313
      %v315 = vpop.f32.mrb[0].mxu0
      %v316 = vpop.f32.mrb[0].mxu0
      %317 = vdwg.mxu0
      %v318 = vlaneseq
      %v319 = vand.u32 %v318, 127
      %v320 = vadd.s32 %v319, 128
      %s321 = smul.u32 %s21, 256
      %v322 = vstv %s321
      %v323 = vadd.s32 %v322, %v319
      %v324 = vadd.s32 %v322, %v320
      %vm325 = vcmp.lt.s32.totalorder %v323, 224
      %vm326 = vcmp.lt.s32.totalorder %v324, 224
      %v327 = vsel %vm325, %v312, 0.0
      %v328 = vsel %vm326, %v314, 0.0
      %v329 = vld [vmem:[#allocation2] sm:$0xff]
      %v330 = vadd.f32 %v327, %v328
      %331 = vadd.xlane.f32.xlu0 %v330
      %v332 = vpop.xlane.xlu0 %331
      %v333 = vadd.f32 %v329, %v332
      %vm334 = vcmask 7168
      %335 = vst.msk [vmem:[#allocation2] sm:$0xff] %vm334, %v333
      %v336 = vld [vmem:[#allocation3] sm:$0xff]
      %v337 = vmul.f32 %v327, %v327
      %v338 = vmul.f32 %v328, %v328
      %v339 = vadd.f32 %v337, %v338
      %340 = vadd.xlane.f32.xlu0 %v339
      %v341 = vpop.xlane.xlu0 %340
      %v342 = vadd.f32 %v336, %v341
      %343 = vst.msk [vmem:[#allocation3] sm:$0xff] %vm334, %v342
      %v344 = vpack.c.bf16 %v327, %v327
      %v345 = vpack.c.bf16 %v328, %v328
      %v348 = vunpack.c.l.b16 %v344
      %v349 = vunpack.c.l.b16 %v345
      %v350 = vpack.c.b16 %v349, %v348
      %s352 = sshra.s32 %s321, 7
      %s353 = sand.u32 %s321, 127
      %s354 = smul.u32 %s20, 2
      %s355 = sadd.s32 %s352, %s354
      %s356 = smul.addr %s355, 4
      %s357 = scalar_lea.vmem %s219, %s356
      %358 = vst [vmem:[%s357] sm:$0xff] %v350
      %p359 = scmp.eq.s32.totalorder %s20, 9
      %p360 = pnand %p359, %p222
      %p361 = pneg %p360
      // Predicated region
      $region37: #{_lambda_.2} parent=31 // pred_check
        _
      $region38: #{_lambda_.2} parent=31 // pred_check_branch
        %363 = sbr.rel (%p360) target = $region40
      $region39: #{_lambda_.2} parent=31 // pred_region
        %v364 = vld [vmem:[#allocation2] sm:$0xff]
        %v365 = vmul.f32 %v364, 0.00044642857
        %v366 = vld [vmem:[#allocation3] sm:$0xff]
        %v367 = vmul.f32 %v366, 0.00044642857
        %v368 = vmul.f32 %v365, %v365
        %v369 = vsub.f32 %v367, %v368
        %v370 = vadd.f32 %v369, 1e-05
        %v371 = vrsqrt.pop %v370
        %v372 = vsub.f32 0.0, %v365
        %v373 = vmul.f32 %v372, %v371
        %v374 = vld [vmem:[%s219] sm:$0xff]
        %v375 = vld [vmem:[%s219 + $0x8] sm:$0xff]
        %v376 = vld [vmem:[%s219 + $0x10] sm:$0xff]
        %v377 = vld [vmem:[%s219 + $0x18] sm:$0xff]
        %v378 = vld [vmem:[%s219 + $0x20] sm:$0xff]
        %v379 = vld [vmem:[%s219 + $0x28] sm:$0xff]
        %v380 = vld [vmem:[%s219 + $0x30] sm:$0xff]
        %v381 = vld [vmem:[%s219 + $0x38] sm:$0xff]
        %v382 = vld [vmem:[%s219 + $0x40] sm:$0xff]
        %v383 = vld [vmem:[%s219 + $0x48] sm:$0xff]
        %v384 = vunpack.c.l.bf16 %v374
        %v385 = vunpack.c.h.bf16 %v374
        %v386 = vunpack.c.l.bf16 %v375
        %v387 = vunpack.c.h.bf16 %v375
        %v388 = vunpack.c.l.bf16 %v376
        %v389 = vunpack.c.h.bf16 %v376
        %v390 = vunpack.c.l.bf16 %v377
        %v391 = vunpack.c.h.bf16 %v377
        %v392 = vunpack.c.l.bf16 %v378
        %v393 = vunpack.c.h.bf16 %v378
        %v394 = vunpack.c.l.bf16 %v379
        %v395 = vunpack.c.h.bf16 %v379
        %v396 = vunpack.c.l.bf16 %v380
        %v397 = vunpack.c.h.bf16 %v380
        %v398 = vunpack.c.l.bf16 %v381
        %v399 = vunpack.c.h.bf16 %v381
        %v400 = vunpack.c.l.bf16 %v382
        %v401 = vunpack.c.h.bf16 %v382
        %v402 = vunpack.c.l.bf16 %v383
        %v403 = vunpack.c.h.bf16 %v383
        %405 = vset.pattern.permute.xlu0 0
        %406 = vperm.xlu0 %405, %v371
        %v407 = vpop.permute.xlu0 %406
        %v409 = vmul.f32 %v384, %v407
        %v410 = vmul.f32 %v385, %v407
        %v411 = vmul.f32 %v386, %v407
        %v412 = vmul.f32 %v387, %v407
        %v413 = vmul.f32 %v388, %v407
        %v414 = vmul.f32 %v389, %v407
        %v415 = vmul.f32 %v390, %v407
        %v416 = vmul.f32 %v391, %v407
        %v417 = vmul.f32 %v392, %v407
        %v418 = vmul.f32 %v393, %v407
        %v419 = vmul.f32 %v394, %v407
        %v420 = vmul.f32 %v395, %v407
        %v421 = vmul.f32 %v396, %v407
        %v422 = vmul.f32 %v397, %v407
        %v423 = vmul.f32 %v398, %v407
        %v424 = vmul.f32 %v399, %v407
        %v425 = vmul.f32 %v400, %v407
        %v426 = vmul.f32 %v401, %v407
        %v427 = vmul.f32 %v402, %v407
        %v428 = vmul.f32 %v403, %v407
        %430 = vset.pattern.permute.xlu0 0
        %431 = vperm.xlu0 %430, %v373
        %v432 = vpop.permute.xlu0 %431
        %v434 = vadd.f32 %v409, %v432
        %v435 = vadd.f32 %v410, %v432
        %v436 = vadd.f32 %v411, %v432
        %v437 = vadd.f32 %v412, %v432
        %v438 = vadd.f32 %v413, %v432
        %v439 = vadd.f32 %v414, %v432
        %v440 = vadd.f32 %v415, %v432
        %v441 = vadd.f32 %v416, %v432
        %v442 = vadd.f32 %v417, %v432
        %v443 = vadd.f32 %v418, %v432
        %v444 = vadd.f32 %v419, %v432
        %v445 = vadd.f32 %v420, %v432
        %v446 = vadd.f32 %v421, %v432
        %v447 = vadd.f32 %v422, %v432
        %v448 = vadd.f32 %v423, %v432
        %v449 = vadd.f32 %v424, %v432
        %v450 = vadd.f32 %v425, %v432
        %v451 = vadd.f32 %v426, %v432
        %v452 = vadd.f32 %v427, %v432
        %v453 = vadd.f32 %v428, %v432
        %v454 = vmax.f32 %v434, 0.0
        %v455 = vmax.f32 %v435, 0.0
        %v456 = vmax.f32 %v436, 0.0
        %v457 = vmax.f32 %v437, 0.0
        %v458 = vmax.f32 %v438, 0.0
        %v459 = vmax.f32 %v439, 0.0
        %v460 = vmax.f32 %v440, 0.0
        %v461 = vmax.f32 %v441, 0.0
        %v462 = vmax.f32 %v442, 0.0
        %v463 = vmax.f32 %v443, 0.0
        %v464 = vmax.f32 %v444, 0.0
        %v465 = vmax.f32 %v445, 0.0
        %v466 = vmax.f32 %v446, 0.0
        %v467 = vmax.f32 %v447, 0.0
        %v468 = vmax.f32 %v448, 0.0
        %v469 = vmax.f32 %v449, 0.0
        %v470 = vmax.f32 %v450, 0.0
        %v471 = vmax.f32 %v451, 0.0
        %v472 = vmax.f32 %v452, 0.0
        %v473 = vmax.f32 %v453, 0.0
        %v474 = vpack.c.bf16 %v454, %v454
        %v475 = vpack.c.bf16 %v455, %v455
        %v476 = vpack.c.bf16 %v456, %v456
        %v477 = vpack.c.bf16 %v457, %v457
        %v478 = vpack.c.bf16 %v458, %v458
        %v479 = vpack.c.bf16 %v459, %v459
        %v480 = vpack.c.bf16 %v460, %v460
        %v481 = vpack.c.bf16 %v461, %v461
        %v482 = vpack.c.bf16 %v462, %v462
        %v483 = vpack.c.bf16 %v463, %v463
        %v484 = vpack.c.bf16 %v464, %v464
        %v485 = vpack.c.bf16 %v465, %v465
        %v486 = vpack.c.bf16 %v466, %v466
        %v487 = vpack.c.bf16 %v467, %v467
        %v488 = vpack.c.bf16 %v468, %v468
        %v489 = vpack.c.bf16 %v469, %v469
        %v490 = vpack.c.bf16 %v470, %v470
        %v491 = vpack.c.bf16 %v471, %v471
        %v492 = vpack.c.bf16 %v472, %v472
        %v493 = vpack.c.bf16 %v473, %v473
        %v514 = vunpack.c.l.b16 %v474
        %v515 = vunpack.c.l.b16 %v475
        %v516 = vunpack.c.l.b16 %v476
        %v517 = vunpack.c.l.b16 %v477
        %v518 = vunpack.c.l.b16 %v478
        %v519 = vunpack.c.l.b16 %v479
        %v520 = vunpack.c.l.b16 %v480
        %v521 = vunpack.c.l.b16 %v481
        %v522 = vunpack.c.l.b16 %v482
        %v523 = vunpack.c.l.b16 %v483
        %v524 = vunpack.c.l.b16 %v484
        %v525 = vunpack.c.l.b16 %v485
        %v526 = vunpack.c.l.b16 %v486
        %v527 = vunpack.c.l.b16 %v487
        %v528 = vunpack.c.l.b16 %v488
        %v529 = vunpack.c.l.b16 %v489
        %v530 = vunpack.c.l.b16 %v490
        %v531 = vunpack.c.l.b16 %v491
        %v532 = vunpack.c.l.b16 %v492
        %v533 = vunpack.c.l.b16 %v493
        %v534 = vpack.c.b16 %v515, %v514
        %v535 = vpack.c.b16 %v517, %v516
        %v536 = vpack.c.b16 %v519, %v518
        %v537 = vpack.c.b16 %v521, %v520
        %v538 = vpack.c.b16 %v523, %v522
        %v539 = vpack.c.b16 %v525, %v524
        %v540 = vpack.c.b16 %v527, %v526
        %v541 = vpack.c.b16 %v529, %v528
        %v542 = vpack.c.b16 %v531, %v530
        %v543 = vpack.c.b16 %v533, %v532
        %554 = vst [vmem:[%s219] sm:$0xff] %v534
        %555 = vst [vmem:[%s219 + $0x8] sm:$0xff] %v535
        %556 = vst [vmem:[%s219 + $0x10] sm:$0xff] %v536
        %557 = vst [vmem:[%s219 + $0x18] sm:$0xff] %v537
        %558 = vst [vmem:[%s219 + $0x20] sm:$0xff] %v538
        %559 = vst [vmem:[%s219 + $0x28] sm:$0xff] %v539
        %560 = vst [vmem:[%s219 + $0x30] sm:$0xff] %v540
        %561 = vst [vmem:[%s219 + $0x38] sm:$0xff] %v541
        %562 = vst [vmem:[%s219 + $0x40] sm:$0xff] %v542
        %563 = vst [vmem:[%s219 + $0x48] sm:$0xff] %v543
      $region40: #{_lambda_.2} parent=31 // pred_fallthru
        _
      %p564 = scmp.lt.s32.totalorder %s19, 1
      %s565 = scalar_select %p564, %s19, 1
      %s566 = smul.addr %s565, 20
      %s567 = smul.addr %s566, 4
      %s568 = scalar_lea.vmem %s3, %s567
      // Predicated region
      $region41: #{_lambda_.2} parent=31 // pred_check
        %p569 = pneg %p123
      $region42: #{_lambda_.2} parent=31 // pred_check_branch
        %571 = sbr.rel (%p569) target = $region44
      $region43: #{_lambda_.2} parent=31 // pred_region
        _
      $region44: #{_lambda_.2} parent=31 // pred_fallthru
        _
    $region32: #{_lambda_.2} parent=5 // pred_fallthru
      _
    %p572 = scmp.le.s32.totalorder 2, %s9
    // Predicated region
    $region45: #{_lambda_.2} parent=5 // pred_check
      %p573 = pneg %p572
    $region46: #{_lambda_.2} parent=5 // pred_check_branch
      %575 = sbr.rel (%p573) target = $region48
    $region47: #{_lambda_.2} parent=5 // pred_region
      %s576 = ssub.s32 %s9, 2
      // Predicated region
      $region49: #{_lambda_.2} parent=47 // pred_check
        %p577 = pneg %p129
      $region50: #{_lambda_.2} parent=47 // pred_check_branch
        %579 = sbr.rel (%p577) target = $region52
      $region51: #{_lambda_.2} parent=47 // pred_region
        %p580 = scmp.lt.s32.totalorder %s22, 1
        %s581 = scalar_select %p580, %s22, 1
        %s582 = smul.addr %s581, 20
        %s583 = smul.addr %s582, 4
        %s584 = scalar_lea.vmem %s3, %s583
      $region52: #{_lambda_.2} parent=47 // pred_fallthru
        _
    $region48: #{_lambda_.2} parent=5 // pred_fallthru
      _
  $region6: #{_lambda_.2} parent=0 // loop_footer
    %s13 = sadd.s32 1, %s9
  $region7: #{_lambda_.2} parent=0 // loop_footer_branch
    %8 = sbr.rel target = $region3
  $region8: #{_lambda_.2} parent=0 // loop_exit
    _

// kernel: _lambda_.3
$region0: #{_lambda_.3}
  #allocation0 [shape = 'u32[]', space=smem, size = 0x4, offset = 0x4, fixed_abs, tag = 'smem constant byte address 0x4 - core index']
  #allocation1 [shape = 'u32[144,128]{1,0:T(1,128)}', space=vmem, size = 0x12000, scoped, tag = 'internal scratch']
  #allocation2 [shape = 'f32[8,1]{1,0:T(8,128)}', space=vmem, size = 0x1000, scoped, tag = 'scratch operand']
  #allocation3 [shape = 'f32[8,1]{1,0:T(8,128)}', space=vmem, size = 0x1000, scoped, tag = 'scratch operand']
  %s0 = inlined_call_operand.vmem [shape: bf16[3,8,8], index: 0, kind: input, shape index: {}]
  %s1 = inlined_call_operand.vmem [shape: f32[8,1], index: 1, kind: input, shape index: {}]
  %s2 = inlined_call_operand.vmem [shape: bf16[2,10,8,256], index: 2, kind: input, shape index: {}]
  %s3 = inlined_call_operand.vmem [shape: f32[2,8,8,256], index: 3, kind: output, shape index: {}]
  %s4 = sld [smem:[#allocation0]]
  $region53: #{_lambda_.3} parent=0
    _
  %s6 = ssub.s32 1, %s4
  %s7 = scalar_select 0, %s6, %s4
  loop: start=0, step=1, limit=18
  $region2: #{_lambda_.3} parent=0 // loop_pre_header
    _
  $region3: #{_lambda_.3} parent=0 // loop_header
    %s9 = sphi 0, %s13
    %p10 = scmp.ge.s32.totalorder %s9, 18
    %s16 = sphi 0, %s35
    %s17 = sphi 0, %s31
    %s18 = sphi 0, %s27
    %s19 = sphi 0, %s16
    %s20 = sphi 0, %s17
    %s21 = sphi 0, %s18
    %s22 = sphi 0, %s19
    %s23 = sphi 0, %s20
    %s24 = sphi 0, %s21
    %s36 = sphi 0, %s36
    %s38 = sphi 0, %s36
    %s39 = sphi 0, %s38
    %s53 = sphi 0, %s39
    %s57 = sphi 0, %s57
    %s59 = sphi 0, %s57
    %s60 = sphi 0, %s59
    %s74 = sphi 0, %s60
    %s82 = sphi 0, %s84
    %s85 = sphi 0, %s82
    %s86 = sphi 0, %s85
    %s102 = sphi 0, %s86
    %s108 = sphi 0, %s110
    %s111 = sphi 0, %s108
    %s112 = sphi 0, %s111
    %s128 = sphi 0, %s112
  $region4: #{_lambda_.3} parent=0 // loop_header_branch
    %12 = sbr.rel (%p10) target = $region8
  $region5: #{_lambda_.3} parent=0 // loop_body
    %s14 = ssub.s32 %s9, 1
    %s15 = ssub.s32 %s9, 2
    %s25 = sadd.s32 1, %s18
    %p26 = scmp.ge.s32.totalorder %s25, 8
    %s27 = scalar_select %p26, 0, %s25
    %s28 = sadd.s32 1, %s17
    %s29 = scalar_select %p26, %s28, %s17
    %p30 = scmp.ge.s32.totalorder %s29, 1
    %s31 = scalar_select %p30, 0, %s29
    %s32 = sadd.s32 1, %s16
    %s33 = scalar_select %p30, %s32, %s16
    %p34 = scmp.ge.s32.totalorder %s33, 2
    %s35 = scalar_select %p34, 0, %s33
    %s37 = sadd.s32 %s36, 1
    %p40 = scmp.eq.s32.totalorder %s9, 15
    %p41 = scmp.ne.s32.totalorder %s36, %s38
    %p42 = scmp.eq.s32.totalorder %s9, 0
    %p43 = por %p41, %p42
    %p44 = scmp.ne.s32.totalorder %s36, %s38
    %p45 = scmp.eq.s32.totalorder %s14, 15
    %p46 = por %p44, %p45
    %p47 = scmp.ne.s32.totalorder %s38, %s39
    %p48 = scmp.eq.s32.totalorder %s14, 0
    %p49 = por %p47, %p48
    %p50 = scmp.ne.s32.totalorder %s38, %s39
    %p51 = scmp.eq.s32.totalorder %s15, 15
    %p52 = por %p50, %p51
    %p54 = scmp.ne.s32.totalorder %s39, %s53
    %p55 = scmp.eq.s32.totalorder %s15, 0
    %p56 = por %p54, %p55
    %s58 = sadd.s32 %s57, 1
    %p61 = scmp.eq.s32.totalorder %s9, 15
    %p62 = scmp.ne.s32.totalorder %s57, %s59
    %p63 = scmp.eq.s32.totalorder %s9, 0
    %p64 = por %p62, %p63
    %p65 = scmp.ne.s32.totalorder %s57, %s59
    %p66 = scmp.eq.s32.totalorder %s14, 15
    %p67 = por %p65, %p66
    %p68 = scmp.ne.s32.totalorder %s59, %s60
    %p69 = scmp.eq.s32.totalorder %s14, 0
    %p70 = por %p68, %p69
    %p71 = scmp.ne.s32.totalorder %s59, %s60
    %p72 = scmp.eq.s32.totalorder %s15, 15
    %p73 = por %p71, %p72
    %p75 = scmp.ne.s32.totalorder %s60, %s74
    %p76 = scmp.eq.s32.totalorder %s15, 0
    %p77 = por %p75, %p76
    %s78 = ssub.s32 %s16, %s35
    %s79 = ssub.s32 %s17, %s31
    %s80 = sor.u32 %s78, %s79
    %p81 = scmp.eq.s32.totalorder %s80, 0
    %s83 = sadd.s32 %s82, 1
    %s84 = scalar_select %p81, %s82, %s83
    %p87 = pneg %p81
    %p88 = scmp.eq.s32.totalorder %s9, 15
    %p89 = por %p87, %p88
    %p90 = scmp.ne.s32.totalorder %s82, %s85
    %p91 = scmp.eq.s32.totalorder %s9, 0
    %p92 = por %p90, %p91
    %p93 = scmp.ne.s32.totalorder %s82, %s85
    %p94 = scmp.eq.s32.totalorder %s14, 15
    %p95 = por %p93, %p94
    %p96 = scmp.ne.s32.totalorder %s85, %s86
    %p97 = scmp.eq.s32.totalorder %s14, 0
    %p98 = por %p96, %p97
    %p99 = scmp.ne.s32.totalorder %s85, %s86
    %p100 = scmp.eq.s32.totalorder %s15, 15
    %p101 = por %p99, %p100
    %p103 = scmp.ne.s32.totalorder %s86, %s102
    %p104 = scmp.eq.s32.totalorder %s15, 0
    %p105 = por %p103, %p104
    %s106 = ssub.s32 %s16, %s35
    %p107 = scmp.eq.s32.totalorder %s106, 0
    %s109 = sadd.s32 %s108, 1
    %s110 = scalar_select %p107, %s108, %s109
    %p113 = pneg %p107
    %p114 = scmp.eq.s32.totalorder %s9, 15
    %p115 = por %p113, %p114
    %p116 = scmp.ne.s32.totalorder %s108, %s111
    %p117 = scmp.eq.s32.totalorder %s9, 0
    %p118 = por %p116, %p117
    %p119 = scmp.ne.s32.totalorder %s108, %s111
    %p120 = scmp.eq.s32.totalorder %s14, 15
    %p121 = por %p119, %p120
    %p122 = scmp.ne.s32.totalorder %s111, %s112
    %p123 = scmp.eq.s32.totalorder %s14, 0
    %p124 = por %p122, %p123
    %p125 = scmp.ne.s32.totalorder %s111, %s112
    %p126 = scmp.eq.s32.totalorder %s15, 15
    %p127 = por %p125, %p126
    %p129 = scmp.ne.s32.totalorder %s112, %s128
    %p130 = scmp.eq.s32.totalorder %s15, 0
    %p131 = por %p129, %p130
    %p132 = scmp.le.s32.totalorder 1, %s9
    %p133 = scmp.lt.s32.totalorder %s9, 17
    %p134 = pnand %p132, %p133
    %p135 = pneg %p134
    // Predicated region
    $region9: #{_lambda_.3} parent=5 // pred_check
      _
    $region10: #{_lambda_.3} parent=5 // pred_check_branch
      %137 = sbr.rel (%p134) target = $region12
    $region11: #{_lambda_.3} parent=5 // pred_region
      %s138 = ssub.s32 %s9, 1
      // Predicated region
      $region13: #{_lambda_.3} parent=11 // pred_check
        %p139 = pneg %p49
      $region14: #{_lambda_.3} parent=11 // pred_check_branch
        %141 = sbr.rel (%p139) target = $region16
      $region15: #{_lambda_.3} parent=11 // pred_region
        _
      $region16: #{_lambda_.3} parent=11 // pred_fallthru
        _
      // Predicated region
      $region17: #{_lambda_.3} parent=11 // pred_check
        %p142 = pneg %p70
      $region18: #{_lambda_.3} parent=11 // pred_check_branch
        %144 = sbr.rel (%p142) target = $region20
      $region19: #{_lambda_.3} parent=11 // pred_region
        _
      $region20: #{_lambda_.3} parent=11 // pred_fallthru
        _
    $region12: #{_lambda_.3} parent=5 // pred_fallthru
      _
    %p145 = scmp.lt.s32.totalorder %s9, 16
    // Predicated region
    $region21: #{_lambda_.3} parent=5 // pred_check
      %p146 = pneg %p145
    $region22: #{_lambda_.3} parent=5 // pred_check_branch
      %148 = sbr.rel (%p146) target = $region24
    $region23: #{_lambda_.3} parent=5 // pred_region
      // Predicated region
      $region25: #{_lambda_.3} parent=23 // pred_check
        %p149 = pneg %p92
      $region26: #{_lambda_.3} parent=23 // pred_check_branch
        %151 = sbr.rel (%p149) target = $region28
      $region27: #{_lambda_.3} parent=23 // pred_region
        %s152 = smul.u32 2, %s17
        %p153 = scmp.lt.s32.totalorder %s16, 1
        %s154 = scalar_select %p153, %s16, 1
        %p155 = scmp.lt.s32.totalorder %s152, 1
        %s156 = scalar_select %p155, %s152, 1
        %s157 = smul.addr %s154, 20
        %s158 = sadd.s32 %s156, %s157
        %s159 = smul.addr %s158, 4
        %s160 = scalar_lea.vmem %s2, %s159
        %s161 = smul.u32 2, %s17
      $region28: #{_lambda_.3} parent=23 // pred_fallthru
        _
    $region24: #{_lambda_.3} parent=5 // pred_fallthru
      _
    %p162 = scmp.le.s32.totalorder 1, %s9
    %p163 = scmp.lt.s32.totalorder %s9, 17
    %p164 = pnand %p162, %p163
    %p165 = pneg %p164
    // Predicated region
    $region29: #{_lambda_.3} parent=5 // pred_check
      _
    $region30: #{_lambda_.3} parent=5 // pred_check_branch
      %167 = sbr.rel (%p164) target = $region32
    $region31: #{_lambda_.3} parent=5 // pred_region
      %s168 = ssub.s32 %s9, 1
      %p169 = pneg %p49
      %p170 = pneg %p46
      %p171 = pneg %p70
      %p172 = pneg %p67
      %s173 = smul.u32 2, %s20
      %p174 = scmp.lt.s32.totalorder %s19, 1
      %s175 = scalar_select %p174, %s19, 1
      %p176 = scmp.lt.s32.totalorder %s173, 1
      %s177 = scalar_select %p176, %s173, 1
      %s178 = smul.addr %s175, 20
      %s179 = sadd.s32 %s177, %s178
      %s180 = smul.addr %s179, 4
      %s181 = scalar_lea.vmem %s2, %s180
      %p182 = pneg %p98
      %p183 = pneg %p95
      %p184 = pneg %p124
      %p185 = pneg %p121
      %p186 = scmp.lt.s32.totalorder %s19, 1
      %s187 = scalar_select %p186, %s19, 1
      %s188 = smul.addr %s187, 16
      %s189 = smul.addr %s188, 8
      %s190 = scalar_lea.vmem %s3, %s189
      %s191 = smul.u32 2, %s20
      %p192 = scmp.lt.s32.totalorder %s19, 1
      %s193 = scalar_select %p192, %s19, 1
      %p194 = scmp.lt.s32.totalorder %s191, 1
      %s195 = scalar_select %p194, %s191, 1
      %s196 = smul.addr %s193, 20
      %s197 = sadd.s32 %s195, %s196
      %s198 = smul.addr %s197, 4
      %s199 = scalar_lea.vmem %s2, %s198
      %s200 = smul.u32 2, %s20
      %p201 = scmp.lt.s32.totalorder %s19, 1
      %s202 = scalar_select %p201, %s19, 1
      %s203 = smul.addr %s202, 16
      %s204 = smul.addr %s203, 8
      %s205 = scalar_lea.vmem %s3, %s204
      %p207 = scmp.eq.s32.totalorder %s20, 0
      %p208 = scmp.eq.s32.totalorder %s21, 0
      %p209 = pnand %p207, %p208
      %p210 = pneg %p209
      // Predicated region
      $region33: #{_lambda_.3} parent=31 // pred_check
        _
      $region34: #{_lambda_.3} parent=31 // pred_check_branch
        %212 = sbr.rel (%p209) target = $region36
      $region35: #{_lambda_.3} parent=31 // pred_region
        %vm213 = vcmask 7168
        %214 = vst.msk [vmem:[#allocation2] sm:$0xff] %vm213, 0.0
        %215 = vst.msk [vmem:[#allocation3] sm:$0xff] %vm213, 0.0
      $region36: #{_lambda_.3} parent=31 // pred_fallthru
        _
      %s216 = smul.u32 %s21, 2
      %s217 = smul.addr %s216, 4
      %s218 = scalar_lea.vmem %s199, %s217
      %v219 = vld [vmem:[%s218] sm:$0xff]
      %v220 = vld [vmem:[%s218 + $0x8] sm:$0xff]
      %v221 = vld [vmem:[%s218 + $0x10] sm:$0xff]
      %v222 = vld [vmem:[%s0] sm:$0xf]
      %s223 = scalar_lea.vmem %s0, 4
      %v224 = vld [vmem:[%s223] sm:$0xf]
      %v226 = vunpack.c.l.b16 %v220
      %v227 = vunpack.c.h.b16 %v220
      %v228 = vpack.c.b16 %v226, %v226
      %v229 = vpack.c.b16 %v227, %v227
      %vm230 = vcmask 64512
      %v232 = vsel %vm230, %v224, 0
      %vm234 = vcmask 1043456
      %v236 = vsel %vm234, %v228, 0
      %v239 = vsel %vm234, %v229, 0
      %241 = vmatprep.subr.bf16.mxu0 %v239
      %242 = vmatpush1.bf16.msra.mxu0 %v236
      %243 = vmatprep.subr.bf16.mxu0 0
      %244 = vmatpush1.bf16.msra.mxu0 0
      %245 = vmatprep.subr.bf16.mxu0 0
      %246 = vmatpush1.bf16.msra.mxu0 0
      %247 = vmatprep.subr.bf16.mxu0 0
      %248 = vmatpush1.bf16.msra.mxu0 0
      %249 = vmatprep.subr.bf16.mxu0 0
      %250 = vmatpush1.bf16.msra.mxu0 0
      %251 = vmatprep.subr.bf16.mxu0 0
      %252 = vmatpush1.bf16.msra.mxu0 0
      %253 = vmatprep.subr.bf16.mxu0 0
      %254 = vmatpush1.bf16.msra.mxu0 0
      %255 = vmatprep.subr.bf16.mxu0 0
      %256 = vmatpush1.bf16.msra.mxu0 0
      %257 = vmatprep.subr.bf16.mxu0 0
      %258 = vmatpush1.bf16.msra.mxu0 0
      %259 = vmatprep.subr.bf16.mxu0 0
      %260 = vmatpush1.bf16.msra.mxu0 0
      %261 = vmatprep.subr.bf16.mxu0 0
      %262 = vmatpush1.bf16.msra.mxu0 0
      %263 = vmatprep.subr.bf16.mxu0 0
      %264 = vmatpush1.bf16.msra.mxu0 0
      %265 = vmatprep.subr.bf16.mxu0 0
      %266 = vmatpush1.bf16.msra.mxu0 0
      %267 = vmatprep.subr.bf16.mxu0 0
      %268 = vmatpush1.bf16.msra.mxu0 0
      %269 = vmatprep.subr.bf16.mxu0 0
      %270 = vmatpush1.bf16.msra.mxu0 0
      %271 = vmatprep.subr.bf16.mxu0 0
      %272 = vmatpush1.bf16.msra.mxu0 0
      %273 = vmatprep.mubr.bf16.mxu0 0
      %274 = vmatmul.mubr.bf16.gmra.mrb[0].mxu0 %v232
      %v275 = vpop.f32.mrb[0].mxu0
      %v276 = vadd.f32 0.0, %v275
      %v277 = vpop.f32.mrb[0].mxu0
      %v278 = vadd.f32 0.0, %v277
      %v279 = vpop.f32.mrb[0].mxu0
      %v280 = vpop.f32.mrb[0].mxu0
      %281 = vdwg.mxu0
      %v283 = vunpack.c.l.b16 %v219
      %v284 = vunpack.c.h.b16 %v219
      %v285 = vpack.c.b16 %v283, %v283
      %v286 = vpack.c.b16 %v284, %v284
      %v288 = vsel %vm230, %v222, 0
      %v291 = vsel %vm234, %v285, 0
      %v294 = vsel %vm234, %v286, 0
      %296 = vmatprep.subr.bf16.mxu0 %v294
      %297 = vmatpush1.bf16.msra.mxu0 %v291
      %298 = vmatprep.subr.bf16.mxu0 0
      %299 = vmatpush1.bf16.msra.mxu0 0
      %300 = vmatprep.subr.bf16.mxu0 0
      %301 = vmatpush1.bf16.msra.mxu0 0
      %302 = vmatprep.subr.bf16.mxu0 0
      %303 = vmatpush1.bf16.msra.mxu0 0
      %304 = vmatprep.subr.bf16.mxu0 0
      %305 = vmatpush1.bf16.msra.mxu0 0
      %306 = vmatprep.subr.bf16.mxu0 0
      %307 = vmatpush1.bf16.msra.mxu0 0
      %308 = vmatprep.subr.bf16.mxu0 0
      %309 = vmatpush1.bf16.msra.mxu0 0
      %310 = vmatprep.subr.bf16.mxu0 0
      %311 = vmatpush1.bf16.msra.mxu0 0
      %312 = vmatprep.subr.bf16.mxu0 0
      %313 = vmatpush1.bf16.msra.mxu0 0
      %314 = vmatprep.subr.bf16.mxu0 0
      %315 = vmatpush1.bf16.msra.mxu0 0
      %316 = vmatprep.subr.bf16.mxu0 0
      %317 = vmatpush1.bf16.msra.mxu0 0
      %318 = vmatprep.subr.bf16.mxu0 0
      %319 = vmatpush1.bf16.msra.mxu0 0
      %320 = vmatprep.subr.bf16.mxu0 0
      %321 = vmatpush1.bf16.msra.mxu0 0
      %322 = vmatprep.subr.bf16.mxu0 0
      %323 = vmatpush1.bf16.msra.mxu0 0
      %324 = vmatprep.subr.bf16.mxu0 0
      %325 = vmatpush1.bf16.msra.mxu0 0
      %326 = vmatprep.subr.bf16.mxu0 0
      %327 = vmatpush1.bf16.msra.mxu0 0
      %328 = vmatprep.mubr.bf16.mxu0 0
      %329 = vmatmul.mubr.bf16.gmra.mrb[0].mxu0 %v288
      %v330 = vpop.f32.mrb[0].mxu0
      %v331 = vadd.f32 %v276, %v330
      %v332 = vpop.f32.mrb[0].mxu0
      %v333 = vadd.f32 %v278, %v332
      %v334 = vpop.f32.mrb[0].mxu0
      %v335 = vpop.f32.mrb[0].mxu0
      %336 = vdwg.mxu0
      %s337 = scalar_lea.vmem %s0, 8
      %v338 = vld [vmem:[%s337] sm:$0xf]
      %v340 = vunpack.c.l.b16 %v221
      %v341 = vunpack.c.h.b16 %v221
      %v342 = vpack.c.b16 %v340, %v340
      %v343 = vpack.c.b16 %v341, %v341
      %v345 = vsel %vm230, %v338, 0
      %v348 = vsel %vm234, %v342, 0
      %v351 = vsel %vm234, %v343, 0
      %353 = vmatprep.subr.bf16.mxu0 %v351
      %354 = vmatpush1.bf16.msra.mxu0 %v348
      %355 = vmatprep.subr.bf16.mxu0 0
      %356 = vmatpush1.bf16.msra.mxu0 0
      %357 = vmatprep.subr.bf16.mxu0 0
      %358 = vmatpush1.bf16.msra.mxu0 0
      %359 = vmatprep.subr.bf16.mxu0 0
      %360 = vmatpush1.bf16.msra.mxu0 0
      %361 = vmatprep.subr.bf16.mxu0 0
      %362 = vmatpush1.bf16.msra.mxu0 0
      %363 = vmatprep.subr.bf16.mxu0 0
      %364 = vmatpush1.bf16.msra.mxu0 0
      %365 = vmatprep.subr.bf16.mxu0 0
      %366 = vmatpush1.bf16.msra.mxu0 0
      %367 = vmatprep.subr.bf16.mxu0 0
      %368 = vmatpush1.bf16.msra.mxu0 0
      %369 = vmatprep.subr.bf16.mxu0 0
      %370 = vmatpush1.bf16.msra.mxu0 0
      %371 = vmatprep.subr.bf16.mxu0 0
      %372 = vmatpush1.bf16.msra.mxu0 0
      %373 = vmatprep.subr.bf16.mxu0 0
      %374 = vmatpush1.bf16.msra.mxu0 0
      %375 = vmatprep.subr.bf16.mxu0 0
      %376 = vmatpush1.bf16.msra.mxu0 0
      %377 = vmatprep.subr.bf16.mxu0 0
      %378 = vmatpush1.bf16.msra.mxu0 0
      %379 = vmatprep.subr.bf16.mxu0 0
      %380 = vmatpush1.bf16.msra.mxu0 0
      %381 = vmatprep.subr.bf16.mxu0 0
      %382 = vmatpush1.bf16.msra.mxu0 0
      %383 = vmatprep.subr.bf16.mxu0 0
      %384 = vmatpush1.bf16.msra.mxu0 0
      %385 = vmatprep.mubr.bf16.mxu0 0
      %386 = vmatmul.mubr.bf16.gmra.mrb[0].mxu0 %v345
      %v387 = vpop.f32.mrb[0].mxu0
      %v388 = vadd.f32 0.0, %v387
      %v389 = vpop.f32.mrb[0].mxu0
      %v390 = vadd.f32 0.0, %v389
      %v391 = vpop.f32.mrb[0].mxu0
      %v392 = vpop.f32.mrb[0].mxu0
      %393 = vdwg.mxu0
      %v394 = vadd.f32 %v331, %v388
      %v395 = vadd.f32 %v333, %v390
      %v396 = vld [vmem:[%s1] sm:$0xff]
      %398 = vset.pattern.permute.xlu0 0
      %399 = vperm.xlu0 %398, %v396
      %v400 = vpop.permute.xlu0 %399
      %v402 = vadd.f32 %v394, %v400
      %v403 = vadd.f32 %v395, %v400
      %v404 = vld [vmem:[#allocation2] sm:$0xff]
      %v405 = vadd.f32 %v402, %v403
      %406 = vadd.xlane.f32.xlu0 %v405
      %v407 = vpop.xlane.xlu0 %406
      %v408 = vadd.f32 %v404, %v407
      %vm409 = vcmask 7168
      %410 = vst.msk [vmem:[#allocation2] sm:$0xff] %vm409, %v408
      %v411 = vld [vmem:[#allocation3] sm:$0xff]
      %v412 = vmul.f32 %v402, %v402
      %v413 = vmul.f32 %v403, %v403
      %v414 = vadd.f32 %v412, %v413
      %415 = vadd.xlane.f32.xlu0 %v414
      %v416 = vpop.xlane.xlu0 %415
      %v417 = vadd.f32 %v411, %v416
      %418 = vst.msk [vmem:[#allocation3] sm:$0xff] %vm409, %v417
      %s419 = smul.u32 %s20, 256
      %s420 = sshra.s32 %s419, 7
      %s421 = sand.u32 %s419, 127
      %s422 = sadd.s32 %s420, %s216
      %s423 = smul.addr %s422, 8
      %s424 = scalar_lea.vmem %s205, %s423
      %425 = vst [vmem:[%s424] sm:$0xff] %v402
      %426 = vst [vmem:[%s424 + $0x8] sm:$0xff] %v403
      %p427 = scmp.eq.s32.totalorder %s21, 7
      %p428 = pnand %p207, %p427
      %p429 = pneg %p428
      // Predicated region
      $region37: #{_lambda_.3} parent=31 // pred_check
        _
      $region38: #{_lambda_.3} parent=31 // pred_check_branch
        %431 = sbr.rel (%p428) target = $region40
      $region39: #{_lambda_.3} parent=31 // pred_region
        %v432 = vld [vmem:[#allocation2] sm:$0xff]
        %v433 = vmul.f32 %v432, 0.00048828125
        %v434 = vld [vmem:[#allocation3] sm:$0xff]
        %v435 = vmul.f32 %v434, 0.00048828125
        %v436 = vmul.f32 %v433, %v433
        %v437 = vsub.f32 %v435, %v436
        %v438 = vadd.f32 %v437, 1e-05
        %v439 = vrsqrt.pop %v438
        %v440 = vsub.f32 0.0, %v433
        %v441 = vmul.f32 %v440, %v439
        %v442 = vld [vmem:[%s205] sm:$0xff]
        %v443 = vld [vmem:[%s205 + $0x8] sm:$0xff]
        %v444 = vld [vmem:[%s205 + $0x10] sm:$0xff]
        %v445 = vld [vmem:[%s205 + $0x18] sm:$0xff]
        %v446 = vld [vmem:[%s205 + $0x20] sm:$0xff]
        %v447 = vld [vmem:[%s205 + $0x28] sm:$0xff]
        %v448 = vld [vmem:[%s205 + $0x30] sm:$0xff]
        %v449 = vld [vmem:[%s205 + $0x38] sm:$0xff]
        %v450 = vld [vmem:[%s205 + $0x40] sm:$0xff]
        %v451 = vld [vmem:[%s205 + $0x48] sm:$0xff]
        %v452 = vld [vmem:[%s205 + $0x50] sm:$0xff]
        %v453 = vld [vmem:[%s205 + $0x58] sm:$0xff]
        %v454 = vld [vmem:[%s205 + $0x60] sm:$0xff]
        %v455 = vld [vmem:[%s205 + $0x68] sm:$0xff]
        %v456 = vld [vmem:[%s205 + $0x70] sm:$0xff]
        %v457 = vld [vmem:[%s205 + $0x78] sm:$0xff]
        %459 = vset.pattern.permute.xlu0 0
        %460 = vperm.xlu0 %459, %v439
        %v461 = vpop.permute.xlu0 %460
        %v463 = vmul.f32 %v442, %v461
        %v464 = vmul.f32 %v443, %v461
        %v465 = vmul.f32 %v444, %v461
        %v466 = vmul.f32 %v445, %v461
        %v467 = vmul.f32 %v446, %v461
        %v468 = vmul.f32 %v447, %v461
        %v469 = vmul.f32 %v448, %v461
        %v470 = vmul.f32 %v449, %v461
        %v471 = vmul.f32 %v450, %v461
        %v472 = vmul.f32 %v451, %v461
        %v473 = vmul.f32 %v452, %v461
        %v474 = vmul.f32 %v453, %v461
        %v475 = vmul.f32 %v454, %v461
        %v476 = vmul.f32 %v455, %v461
        %v477 = vmul.f32 %v456, %v461
        %v478 = vmul.f32 %v457, %v461
        %480 = vset.pattern.permute.xlu0 0
        %481 = vperm.xlu0 %480, %v441
        %v482 = vpop.permute.xlu0 %481
        %v484 = vadd.f32 %v463, %v482
        %v485 = vadd.f32 %v464, %v482
        %v486 = vadd.f32 %v465, %v482
        %v487 = vadd.f32 %v466, %v482
        %v488 = vadd.f32 %v467, %v482
        %v489 = vadd.f32 %v468, %v482
        %v490 = vadd.f32 %v469, %v482
        %v491 = vadd.f32 %v470, %v482
        %v492 = vadd.f32 %v471, %v482
        %v493 = vadd.f32 %v472, %v482
        %v494 = vadd.f32 %v473, %v482
        %v495 = vadd.f32 %v474, %v482
        %v496 = vadd.f32 %v475, %v482
        %v497 = vadd.f32 %v476, %v482
        %v498 = vadd.f32 %v477, %v482
        %v499 = vadd.f32 %v478, %v482
        %v500 = vmax.f32 %v484, 0.0
        %v501 = vmax.f32 %v485, 0.0
        %v502 = vmax.f32 %v486, 0.0
        %v503 = vmax.f32 %v487, 0.0
        %v504 = vmax.f32 %v488, 0.0
        %v505 = vmax.f32 %v489, 0.0
        %v506 = vmax.f32 %v490, 0.0
        %v507 = vmax.f32 %v491, 0.0
        %v508 = vmax.f32 %v492, 0.0
        %v509 = vmax.f32 %v493, 0.0
        %v510 = vmax.f32 %v494, 0.0
        %v511 = vmax.f32 %v495, 0.0
        %v512 = vmax.f32 %v496, 0.0
        %v513 = vmax.f32 %v497, 0.0
        %v514 = vmax.f32 %v498, 0.0
        %v515 = vmax.f32 %v499, 0.0
        %516 = vst [vmem:[%s205] sm:$0xff] %v500
        %517 = vst [vmem:[%s205 + $0x8] sm:$0xff] %v501
        %518 = vst [vmem:[%s205 + $0x10] sm:$0xff] %v502
        %519 = vst [vmem:[%s205 + $0x18] sm:$0xff] %v503
        %520 = vst [vmem:[%s205 + $0x20] sm:$0xff] %v504
        %521 = vst [vmem:[%s205 + $0x28] sm:$0xff] %v505
        %522 = vst [vmem:[%s205 + $0x30] sm:$0xff] %v506
        %523 = vst [vmem:[%s205 + $0x38] sm:$0xff] %v507
        %524 = vst [vmem:[%s205 + $0x40] sm:$0xff] %v508
        %525 = vst [vmem:[%s205 + $0x48] sm:$0xff] %v509
        %526 = vst [vmem:[%s205 + $0x50] sm:$0xff] %v510
        %527 = vst [vmem:[%s205 + $0x58] sm:$0xff] %v511
        %528 = vst [vmem:[%s205 + $0x60] sm:$0xff] %v512
        %529 = vst [vmem:[%s205 + $0x68] sm:$0xff] %v513
        %530 = vst [vmem:[%s205 + $0x70] sm:$0xff] %v514
        %531 = vst [vmem:[%s205 + $0x78] sm:$0xff] %v515
      $region40: #{_lambda_.3} parent=31 // pred_fallthru
        _
      %p532 = scmp.lt.s32.totalorder %s19, 1
      %s533 = scalar_select %p532, %s19, 1
      %s534 = smul.addr %s533, 16
      %s535 = smul.addr %s534, 8
      %s536 = scalar_lea.vmem %s3, %s535
      // Predicated region
      $region41: #{_lambda_.3} parent=31 // pred_check
        %p537 = pneg %p121
      $region42: #{_lambda_.3} parent=31 // pred_check_branch
        %539 = sbr.rel (%p537) target = $region44
      $region43: #{_lambda_.3} parent=31 // pred_region
        _
      $region44: #{_lambda_.3} parent=31 // pred_fallthru
        _
    $region32: #{_lambda_.3} parent=5 // pred_fallthru
      _
    %p540 = scmp.le.s32.totalorder 2, %s9
    // Predicated region
    $region45: #{_lambda_.3} parent=5 // pred_check
      %p541 = pneg %p540
    $region46: #{_lambda_.3} parent=5 // pred_check_branch
      %543 = sbr.rel (%p541) target = $region48
    $region47: #{_lambda_.3} parent=5 // pred_region
      %s544 = ssub.s32 %s9, 2
      // Predicated region
      $region49: #{_lambda_.3} parent=47 // pred_check
        %p545 = pneg %p127
      $region50: #{_lambda_.3} parent=47 // pred_check_branch
        %547 = sbr.rel (%p545) target = $region52
      $region51: #{_lambda_.3} parent=47 // pred_region
        %p548 = scmp.lt.s32.totalorder %s22, 1
        %s549 = scalar_select %p548, %s22, 1
        %s550 = smul.addr %s549, 16
        %s551 = smul.addr %s550, 8
        %s552 = scalar_lea.vmem %s3, %s551
      $region52: #{_lambda_.3} parent=47 // pred_fallthru
        _
    $region48: #{_lambda_.3} parent=5 // pred_fallthru
      _
  $region6: #{_lambda_.3} parent=0 // loop_footer
    %s13 = sadd.s32 1, %s9
  $region7: #{_lambda_.3} parent=0 // loop_footer_branch
    %8 = sbr.rel target = $region3
  $region8: #{_lambda_.3} parent=0 // loop_exit
    _

</llo_original>
